<compile_context>
chip_gen: v7x
topology: tpu7x:2x2x1
jax: 0.10.0
libtpu: 0.0.40
codegen_flags: <defaults>
</compile_context>

<pallas_src>
import functools

import jax
import jax.numpy as jnp
from jax.experimental import pallas as pl
from jax.experimental.pallas import tpu as pltpu


# ----------------------------------------------------------------------------
# Fused Pallas kernel (no grid: whole model is VMEM-resident at these sizes)
# ----------------------------------------------------------------------------
def _fused_lstm_kernel(num_layers, hidden_dim, seq_len, b_pad, *refs):
    """Multi-layer LSTM (wavefront recurrence) + MLP head in one kernel.

    refs layout (inputs then output):
      refs[0]                      x_tm     (T*B_PAD, input_dim) time-major,
                                            batch padded with zero rows
      refs[1 + 3*l + 0]            W_ih^T   (in_dim_l, 4H)  gate order i,f,g,o
      refs[1 + 3*l + 1]            W_hh^T   (H, 4H)
      refs[1 + 3*l + 2]            b        (1, 4H)         b_ih + b_hh
      refs[1 + 3*L : 1 + 3*L + 4]  w1_t (H,H), b1 (1,H), w2_t (H,128), b2 (1,128)
      refs[-1]                     out      (B_PAD, 128)    lane-dense store
    """
    H = hidden_dim
    L = num_layers
    T = seq_len
    Bp = b_pad
    f32 = jnp.float32

    x_ref = refs[0]
    lstm_refs = refs[1:1 + 3 * L]
    w1_ref, b1_ref, w2_ref, b2_ref, out_ref = refs[1 + 3 * L:]

    # Hoist all weight loads out of the unrolled loops (ref reads are not CSE'd).
    wih = [lstm_refs[3 * l][...] for l in range(L)]       # (in_dim_l, 4H)
    whh = [lstm_refs[3 * l + 1][...] for l in range(L)]   # (H, 4H)
    bias = [lstm_refs[3 * l + 2][...] for l in range(L)]  # (1, 4H)

    # Hoisted layer-0 input projection: one (T*Bp, D) x (D, 4H) MXU matmul,
    # bias folded in.  Per-step rows t*Bp:(t+1)*Bp are sublane-aligned.
    gx0 = jnp.dot(x_ref[...].astype(f32), wih[0],
                  preferred_element_type=f32) + bias[0]   # (T*Bp, 4H)

    # Hoisted lane mask selecting the 'g' quarter (tanh) of the gate tile.
    lane = jax.lax.broadcasted_iota(jnp.int32, (Bp, 4 * H), 1)
    g_mask = (lane >= 2 * H) & (lane < 3 * H)

    # Wavefront state: per-layer (h, c), each (Bp, H).
    h = [jnp.zeros((Bp, H), f32) for _ in range(L)]
    c = [jnp.zeros((Bp, H), f32) for _ in range(L)]

    # Wavefront over diagonals: at diagonal d, layer l computes timestep t=d-l.
    # Every matmul in a diagonal depends only on previous-diagonal state, so
    # the MXU pushes inside a diagonal issue back-to-back (independent), and
    # the dependent chain is T+L-1 diagonal groups instead of T*L steps.
    for d in range(T + L - 1):
        h_prev = list(h)   # snapshot of previous-diagonal outputs
        for l in range(L):
            t = d - l
            if t < 0 or t >= T:
                continue
            if l == 0:
                pre = gx0[t * Bp:(t + 1) * Bp, :] + jnp.dot(
                    h_prev[0], whh[0], preferred_element_type=f32)
            else:
                # Input projection of layer l consumes layer l-1's output from
                # the PREVIOUS diagonal (h_prev), keeping in-diagonal matmuls
                # independent.
                pre = (jnp.dot(h_prev[l - 1], wih[l], preferred_element_type=f32)
                       + jnp.dot(h_prev[l], whh[l], preferred_element_type=f32)
                       + bias[l])
            # Full-tile activation (2 EUP pushes at 128-lane occupancy), then
            # static quarter slices in PyTorch gate order (i, f, g, o).
            act = jnp.where(g_mask, jnp.tanh(pre), jax.nn.sigmoid(pre))
            i_g = act[:, 0:H]
            f_g = act[:, H:2 * H]
            g_g = act[:, 2 * H:3 * H]
            o_g = act[:, 3 * H:4 * H]
            c_new = f_g * c[l] + i_g * g_g
            h[l] = o_g * jnp.tanh(c_new)
            c[l] = c_new
        # TODO(synk): PyTorch applies dropout(p=0.25) between LSTM layers only
        # in training mode; eval-mode semantics (no dropout) implemented here.

    # MLP head on the last layer's final-timestep hidden state.
    h_last = h[L - 1]                                                   # (Bp, H)
    z = jnp.dot(h_last, w1_ref[...], preferred_element_type=f32) + b1_ref[...]
    z = jnp.maximum(z, 0.0)
    # fc2 is lane-padded to 128 outputs -> full-tile, unmasked store.
    y = jnp.dot(z, w2_ref[...], preferred_element_type=f32) + b2_ref[...]
    out_ref[...] = jax.nn.sigmoid(y).astype(out_ref.dtype)


# ----------------------------------------------------------------------------
# Wrapper
# ----------------------------------------------------------------------------
@jax.jit
def lstm_model_forward(x_btd, params):
    """Full forward pass.  x_btd: (B, T, input_dim), batch_first like PyTorch."""
    B, T, D = x_btd.shape
    num_layers = len(params["lstm"])
    H = params["lstm"][0]["whh_t"].shape[0]
    O = params["w2_t"].shape[1]

    B_PAD = ((B + 7) // 8) * 8        # fill full sublane groups
    O_PAD = 128                       # lane-dense head output

    # Pad batch with zero rows and go time-major ONCE in the wrapper:
    # (B, T, D) -> (T*B_PAD, D); padded rows are sliced off at the end.
    x_pad = jnp.zeros((B_PAD, T, D), jnp.float32).at[:B].set(
        x_btd.astype(jnp.float32))
    x_tm = jnp.swapaxes(x_pad, 0, 1).reshape(T * B_PAD, D)

    # Lane-dense fc2: pad output columns to 128 (zeros beyond O).
    w2_pad = jnp.zeros((H, O_PAD), jnp.float32).at[:, :O].set(params["w2_t"])
    b2_pad = jnp.zeros((1, O_PAD), jnp.float32).at[:, :O].set(params["b2"])

    flat_inputs = [x_tm]
    for lp in params["lstm"]:
        flat_inputs += [lp["wih_t"], lp["whh_t"], lp["b"]]
    flat_inputs += [params["w1_t"], params["b1"], w2_pad, b2_pad]

    kernel = functools.partial(_fused_lstm_kernel, num_layers, H, T, B_PAD)
    out_pad = pl.pallas_call(
        kernel,
        out_shape=jax.ShapeDtypeStruct((B_PAD, O_PAD), jnp.float32),
        in_specs=[pl.BlockSpec(memory_space=pltpu.MemorySpace.VMEM)
                  for _ in flat_inputs],
        out_specs=pl.BlockSpec(memory_space=pltpu.MemorySpace.VMEM),
    )(*flat_inputs)
    return out_pad[:B, :O]


# ----------------------------------------------------------------------------
# Deterministic parameter init (PyTorch-style uniform(-1/sqrt(H), 1/sqrt(H)))
# ----------------------------------------------------------------------------
def init_params(key, input_dim, hidden_dim, num_layers, output_dim):
    bound = 1.0 / jnp.sqrt(hidden_dim)
    params = {"lstm": []}
    for layer in range(num_layers):
        d_in = input_dim if layer == 0 else hidden_dim
        key, k1, k2, k3, k4 = jax.random.split(key, 5)
        wih = jax.random.uniform(k1, (4 * hidden_dim, d_in), jnp.float32, -bound, bound)
        whh = jax.random.uniform(k2, (4 * hidden_dim, hidden_dim), jnp.float32, -bound, bound)
        bih = jax.random.uniform(k3, (4 * hidden_dim,), jnp.float32, -bound, bound)
        bhh = jax.random.uniform(k4, (4 * hidden_dim,), jnp.float32, -bound, bound)
        params["lstm"].append({
            "wih_t": wih.T,                       # (d_in, 4H)
            "whh_t": whh.T,                       # (H, 4H)
            "b": (bih + bhh).reshape(1, 4 * hidden_dim),
        })
    key, k1, k2, k3, k4 = jax.random.split(key, 5)
    b1_bound = 1.0 / jnp.sqrt(hidden_dim)
    params["w1_t"] = jax.random.uniform(k1, (hidden_dim, hidden_dim), jnp.float32, -b1_bound, b1_bound)
    params["b1"] = jax.random.uniform(k2, (1, hidden_dim), jnp.float32, -b1_bound, b1_bound)
    params["w2_t"] = jax.random.uniform(k3, (hidden_dim, output_dim), jnp.float32, -b1_bound, b1_bound)
    params["b2"] = jax.random.uniform(k4, (1, output_dim), jnp.float32, -b1_bound, b1_bound)
    return params


# ----------------------------------------------------------------------------
# Pure-JAX reference (for correctness check)
# ----------------------------------------------------------------------------
def ref_forward(x_btd, params):
    B = x_btd.shape[0]
    h_seq = x_btd
    for lp in params["lstm"]:
        H = lp["whh_t"].shape[0]

        def step(carry, x_t, lp=lp, H=H):
            hprev, cprev = carry
            gates = x_t @ lp["wih_t"] + hprev @ lp["whh_t"] + lp["b"][0]
            i = jax.nn.sigmoid(gates[:, 0:H])
            f = jax.nn.sigmoid(gates[:, H:2 * H])
            g = jnp.tanh(gates[:, 2 * H:3 * H])
            o = jax.nn.sigmoid(gates[:, 3 * H:4 * H])
            c = f * cprev + i * g
            hnew = o * jnp.tanh(c)
            return (hnew, c), hnew

        init = (jnp.zeros((B, H), jnp.float32), jnp.zeros((B, H), jnp.float32))
        _, outs = jax.lax.scan(step, init, jnp.transpose(h_seq, (1, 0, 2)))
        h_seq = jnp.transpose(outs, (1, 0, 2))
    z = jnp.maximum(h_seq[:, -1, :] @ params["w1_t"] + params["b1"][0], 0.0)
    y = z @ params["w2_t"] + params["b2"][0]
    return jax.nn.sigmoid(y)


# ----------------------------------------------------------------------------
if __name__ == "__main__":
    B, T = 2, 8
    INPUT_DIM, HIDDEN_DIM, NUM_LAYERS, OUTPUT_DIM = 4, 32, 2, 1

    key = jax.random.PRNGKey(0)
    key, xkey, pkey = jax.random.split(key, 3)
    x = jax.random.normal(xkey, (B, T, INPUT_DIM), jnp.float32)
    params = init_params(pkey, INPUT_DIM, HIDDEN_DIM, NUM_LAYERS, OUTPUT_DIM)

    out = lstm_model_forward(x, params)
    out = jax.block_until_ready(out)

    ref = jax.block_until_ready(ref_forward(x, params))
    assert out.shape == (B, OUTPUT_DIM), out.shape
    assert jnp.allclose(out, ref, atol=1e-5, rtol=1e-5), (out, ref)

    print("KERNEL_OK")
</pallas_src>

<mosaic_0001>
module attributes {stable_mosaic.version = 11 : i64} {
  func.func @_fused_lstm_kernel(%arg0: memref<64x4xf32, #tpu.memory_space<vmem>>, %arg1: memref<4x128xf32, #tpu.memory_space<vmem>>, %arg2: memref<32x128xf32, #tpu.memory_space<vmem>>, %arg3: memref<1x128xf32, #tpu.memory_space<vmem>>, %arg4: memref<32x128xf32, #tpu.memory_space<vmem>>, %arg5: memref<32x128xf32, #tpu.memory_space<vmem>>, %arg6: memref<1x128xf32, #tpu.memory_space<vmem>>, %arg7: memref<32x32xf32, #tpu.memory_space<vmem>>, %arg8: memref<1x32xf32, #tpu.memory_space<vmem>>, %arg9: memref<32x128xf32, #tpu.memory_space<vmem>>, %arg10: memref<1x128xf32, #tpu.memory_space<vmem>>, %arg11: memref<8x128xf32, #tpu.memory_space<vmem>>) attributes {dimension_semantics = [], scalar_prefetch = 0 : i64, scratch_operands = 0 : i64, tpu.core_type = #tpu.core_type<tc>} {
    %c0 = arith.constant 0 : index
    %c0_0 = arith.constant 0 : index
    %0 = vector.load %arg1[%c0, %c0_0] : memref<4x128xf32, #tpu.memory_space<vmem>>, vector<4x128xf32>
    %c0_1 = arith.constant 0 : index
    %c0_2 = arith.constant 0 : index
    %1 = vector.load %arg4[%c0_1, %c0_2] : memref<32x128xf32, #tpu.memory_space<vmem>>, vector<32x128xf32>
    %c0_3 = arith.constant 0 : index
    %c0_4 = arith.constant 0 : index
    %2 = vector.load %arg2[%c0_3, %c0_4] : memref<32x128xf32, #tpu.memory_space<vmem>>, vector<32x128xf32>
    %c0_5 = arith.constant 0 : index
    %c0_6 = arith.constant 0 : index
    %3 = vector.load %arg5[%c0_5, %c0_6] : memref<32x128xf32, #tpu.memory_space<vmem>>, vector<32x128xf32>
    %c0_7 = arith.constant 0 : index
    %c0_8 = arith.constant 0 : index
    %4 = vector.load %arg3[%c0_7, %c0_8] : memref<1x128xf32, #tpu.memory_space<vmem>>, vector<1x128xf32>
    %c0_9 = arith.constant 0 : index
    %c0_10 = arith.constant 0 : index
    %5 = vector.load %arg6[%c0_9, %c0_10] : memref<1x128xf32, #tpu.memory_space<vmem>>, vector<1x128xf32>
    %c0_11 = arith.constant 0 : index
    %c0_12 = arith.constant 0 : index
    %6 = vector.load %arg0[%c0_11, %c0_12] : memref<64x4xf32, #tpu.memory_space<vmem>>, vector<64x4xf32>
    %cst = arith.constant dense<0.000000e+00> : vector<64x128xf32>
    %7 = tpu.matmul %6, %0, %cst {dimension_numbers = #tpu.dot_dimension_numbers<[1], [0], [0], [1], [0, 0, 1, 1], [], []>} : vector<64x4xf32>, vector<4x128xf32>, vector<64x128xf32> -> vector<64x128xf32>
    %8 = vector.broadcast %4 : vector<1x128xf32> to vector<64x128xf32>
    %9 = arith.addf %7, %8 : vector<64x128xf32>
    %10 = tpu.iota {dimensions = array<i32: 1>} : vector<8x128xi32>
    %c64_i32 = arith.constant 64 : i32
    %11 = vector.broadcast %c64_i32 : i32 to vector<8x128xi32>
    %12 = arith.cmpi sge, %10, %11 : vector<8x128xi32>
    %c96_i32 = arith.constant 96 : i32
    %13 = vector.broadcast %c96_i32 : i32 to vector<8x128xi32>
    %14 = arith.cmpi slt, %10, %13 : vector<8x128xi32>
    %15 = arith.andi %12, %14 : vector<8x128xi1>
    %cst_13 = arith.constant 0.000000e+00 : f32
    %16 = vector.broadcast %cst_13 : f32 to vector<8x32xf32>
    %cst_14 = arith.constant 0.000000e+00 : f32
    %17 = vector.broadcast %cst_14 : f32 to vector<8x32xf32>
    %cst_15 = arith.constant 0.000000e+00 : f32
    %18 = vector.broadcast %cst_15 : f32 to vector<8x32xf32>
    %cst_16 = arith.constant 0.000000e+00 : f32
    %19 = vector.broadcast %cst_16 : f32 to vector<8x32xf32>
    %20 = vector.extract_strided_slice %9 {offsets = [0, 0], sizes = [8, 128], strides = [1, 1]} : vector<64x128xf32> to vector<8x128xf32>
    %cst_17 = arith.constant dense<0.000000e+00> : vector<8x128xf32>
    %21 = tpu.matmul %16, %2, %cst_17 {dimension_numbers = #tpu.dot_dimension_numbers<[1], [0], [0], [1], [0, 0, 1, 1], [], []>} : vector<8x32xf32>, vector<32x128xf32>, vector<8x128xf32> -> vector<8x128xf32>
    %22 = arith.addf %20, %21 : vector<8x128xf32>
    %23 = math.tanh %22 : vector<8x128xf32>
    %24 = arith.negf %22 : vector<8x128xf32>
    %25 = math.exp %24 : vector<8x128xf32>
    %cst_18 = arith.constant 1.000000e+00 : f32
    %26 = vector.broadcast %cst_18 : f32 to vector<8x128xf32>
    %27 = arith.addf %26, %25 : vector<8x128xf32>
    %28 = arith.divf %26, %27 : vector<8x128xf32>
    %29 = arith.select %15, %23, %28 : vector<8x128xi1>, vector<8x128xf32>
    %30 = vector.extract_strided_slice %29 {offsets = [0, 0], sizes = [8, 32], strides = [1, 1]} : vector<8x128xf32> to vector<8x32xf32>
    %31 = vector.extract_strided_slice %29 {offsets = [0, 32], sizes = [8, 32], strides = [1, 1]} : vector<8x128xf32> to vector<8x32xf32>
    %32 = vector.extract_strided_slice %29 {offsets = [0, 64], sizes = [8, 32], strides = [1, 1]} : vector<8x128xf32> to vector<8x32xf32>
    %33 = vector.extract_strided_slice %29 {offsets = [0, 96], sizes = [8, 32], strides = [1, 1]} : vector<8x128xf32> to vector<8x32xf32>
    %34 = arith.mulf %31, %18 : vector<8x32xf32>
    %35 = arith.mulf %30, %32 : vector<8x32xf32>
    %36 = arith.addf %34, %35 : vector<8x32xf32>
    %37 = math.tanh %36 : vector<8x32xf32>
    %38 = arith.mulf %33, %37 : vector<8x32xf32>
    %39 = vector.extract_strided_slice %9 {offsets = [8, 0], sizes = [8, 128], strides = [1, 1]} : vector<64x128xf32> to vector<8x128xf32>
    %cst_19 = arith.constant dense<0.000000e+00> : vector<8x128xf32>
    %40 = tpu.matmul %38, %2, %cst_19 {dimension_numbers = #tpu.dot_dimension_numbers<[1], [0], [0], [1], [0, 0, 1, 1], [], []>} : vector<8x32xf32>, vector<32x128xf32>, vector<8x128xf32> -> vector<8x128xf32>
    %41 = arith.addf %39, %40 : vector<8x128xf32>
    %42 = math.tanh %41 : vector<8x128xf32>
    %43 = arith.negf %41 : vector<8x128xf32>
    %44 = math.exp %43 : vector<8x128xf32>
    %cst_20 = arith.constant 1.000000e+00 : f32
    %45 = vector.broadcast %cst_20 : f32 to vector<8x128xf32>
    %46 = arith.addf %45, %44 : vector<8x128xf32>
    %47 = arith.divf %45, %46 : vector<8x128xf32>
    %48 = arith.select %15, %42, %47 : vector<8x128xi1>, vector<8x128xf32>
    %49 = vector.extract_strided_slice %48 {offsets = [0, 0], sizes = [8, 32], strides = [1, 1]} : vector<8x128xf32> to vector<8x32xf32>
    %50 = vector.extract_strided_slice %48 {offsets = [0, 32], sizes = [8, 32], strides = [1, 1]} : vector<8x128xf32> to vector<8x32xf32>
    %51 = vector.extract_strided_slice %48 {offsets = [0, 64], sizes = [8, 32], strides = [1, 1]} : vector<8x128xf32> to vector<8x32xf32>
    %52 = vector.extract_strided_slice %48 {offsets = [0, 96], sizes = [8, 32], strides = [1, 1]} : vector<8x128xf32> to vector<8x32xf32>
    %53 = arith.mulf %50, %36 : vector<8x32xf32>
    %54 = arith.mulf %49, %51 : vector<8x32xf32>
    %55 = arith.addf %53, %54 : vector<8x32xf32>
    %56 = math.tanh %55 : vector<8x32xf32>
    %57 = arith.mulf %52, %56 : vector<8x32xf32>
    %cst_21 = arith.constant dense<0.000000e+00> : vector<8x128xf32>
    %58 = tpu.matmul %38, %1, %cst_21 {dimension_numbers = #tpu.dot_dimension_numbers<[1], [0], [0], [1], [0, 0, 1, 1], [], []>} : vector<8x32xf32>, vector<32x128xf32>, vector<8x128xf32> -> vector<8x128xf32>
    %cst_22 = arith.constant dense<0.000000e+00> : vector<8x128xf32>
    %59 = tpu.matmul %17, %3, %cst_22 {dimension_numbers = #tpu.dot_dimension_numbers<[1], [0], [0], [1], [0, 0, 1, 1], [], []>} : vector<8x32xf32>, vector<32x128xf32>, vector<8x128xf32> -> vector<8x128xf32>
    %60 = arith.addf %58, %59 : vector<8x128xf32>
    %61 = vector.broadcast %5 : vector<1x128xf32> to vector<8x128xf32>
    %62 = arith.addf %60, %61 : vector<8x128xf32>
    %63 = math.tanh %62 : vector<8x128xf32>
    %64 = arith.negf %62 : vector<8x128xf32>
    %65 = math.exp %64 : vector<8x128xf32>
    %cst_23 = arith.constant 1.000000e+00 : f32
    %66 = vector.broadcast %cst_23 : f32 to vector<8x128xf32>
    %67 = arith.addf %66, %65 : vector<8x128xf32>
    %68 = arith.divf %66, %67 : vector<8x128xf32>
    %69 = arith.select %15, %63, %68 : vector<8x128xi1>, vector<8x128xf32>
    %70 = vector.extract_strided_slice %69 {offsets = [0, 0], sizes = [8, 32], strides = [1, 1]} : vector<8x128xf32> to vector<8x32xf32>
    %71 = vector.extract_strided_slice %69 {offsets = [0, 32], sizes = [8, 32], strides = [1, 1]} : vector<8x128xf32> to vector<8x32xf32>
    %72 = vector.extract_strided_slice %69 {offsets = [0, 64], sizes = [8, 32], strides = [1, 1]} : vector<8x128xf32> to vector<8x32xf32>
    %73 = vector.extract_strided_slice %69 {offsets = [0, 96], sizes = [8, 32], strides = [1, 1]} : vector<8x128xf32> to vector<8x32xf32>
    %74 = arith.mulf %71, %19 : vector<8x32xf32>
    %75 = arith.mulf %70, %72 : vector<8x32xf32>
    %76 = arith.addf %74, %75 : vector<8x32xf32>
    %77 = math.tanh %76 : vector<8x32xf32>
    %78 = arith.mulf %73, %77 : vector<8x32xf32>
    %79 = vector.extract_strided_slice %9 {offsets = [16, 0], sizes = [8, 128], strides = [1, 1]} : vector<64x128xf32> to vector<8x128xf32>
    %cst_24 = arith.constant dense<0.000000e+00> : vector<8x128xf32>
    %80 = tpu.matmul %57, %2, %cst_24 {dimension_numbers = #tpu.dot_dimension_numbers<[1], [0], [0], [1], [0, 0, 1, 1], [], []>} : vector<8x32xf32>, vector<32x128xf32>, vector<8x128xf32> -> vector<8x128xf32>
    %81 = arith.addf %79, %80 : vector<8x128xf32>
    %82 = math.tanh %81 : vector<8x128xf32>
    %83 = arith.negf %81 : vector<8x128xf32>
    %84 = math.exp %83 : vector<8x128xf32>
    %cst_25 = arith.constant 1.000000e+00 : f32
    %85 = vector.broadcast %cst_25 : f32 to vector<8x128xf32>
    %86 = arith.addf %85, %84 : vector<8x128xf32>
    %87 = arith.divf %85, %86 : vector<8x128xf32>
    %88 = arith.select %15, %82, %87 : vector<8x128xi1>, vector<8x128xf32>
    %89 = vector.extract_strided_slice %88 {offsets = [0, 0], sizes = [8, 32], strides = [1, 1]} : vector<8x128xf32> to vector<8x32xf32>
    %90 = vector.extract_strided_slice %88 {offsets = [0, 32], sizes = [8, 32], strides = [1, 1]} : vector<8x128xf32> to vector<8x32xf32>
    %91 = vector.extract_strided_slice %88 {offsets = [0, 64], sizes = [8, 32], strides = [1, 1]} : vector<8x128xf32> to vector<8x32xf32>
    %92 = vector.extract_strided_slice %88 {offsets = [0, 96], sizes = [8, 32], strides = [1, 1]} : vector<8x128xf32> to vector<8x32xf32>
    %93 = arith.mulf %90, %55 : vector<8x32xf32>
    %94 = arith.mulf %89, %91 : vector<8x32xf32>
    %95 = arith.addf %93, %94 : vector<8x32xf32>
    %96 = math.tanh %95 : vector<8x32xf32>
    %97 = arith.mulf %92, %96 : vector<8x32xf32>
    %cst_26 = arith.constant dense<0.000000e+00> : vector<8x128xf32>
    %98 = tpu.matmul %57, %1, %cst_26 {dimension_numbers = #tpu.dot_dimension_numbers<[1], [0], [0], [1], [0, 0, 1, 1], [], []>} : vector<8x32xf32>, vector<32x128xf32>, vector<8x128xf32> -> vector<8x128xf32>
    %cst_27 = arith.constant dense<0.000000e+00> : vector<8x128xf32>
    %99 = tpu.matmul %78, %3, %cst_27 {dimension_numbers = #tpu.dot_dimension_numbers<[1], [0], [0], [1], [0, 0, 1, 1], [], []>} : vector<8x32xf32>, vector<32x128xf32>, vector<8x128xf32> -> vector<8x128xf32>
    %100 = arith.addf %98, %99 : vector<8x128xf32>
    %101 = vector.broadcast %5 : vector<1x128xf32> to vector<8x128xf32>
    %102 = arith.addf %100, %101 : vector<8x128xf32>
    %103 = math.tanh %102 : vector<8x128xf32>
    %104 = arith.negf %102 : vector<8x128xf32>
    %105 = math.exp %104 : vector<8x128xf32>
    %cst_28 = arith.constant 1.000000e+00 : f32
    %106 = vector.broadcast %cst_28 : f32 to vector<8x128xf32>
    %107 = arith.addf %106, %105 : vector<8x128xf32>
    %108 = arith.divf %106, %107 : vector<8x128xf32>
    %109 = arith.select %15, %103, %108 : vector<8x128xi1>, vector<8x128xf32>
    %110 = vector.extract_strided_slice %109 {offsets = [0, 0], sizes = [8, 32], strides = [1, 1]} : vector<8x128xf32> to vector<8x32xf32>
    %111 = vector.extract_strided_slice %109 {offsets = [0, 32], sizes = [8, 32], strides = [1, 1]} : vector<8x128xf32> to vector<8x32xf32>
    %112 = vector.extract_strided_slice %109 {offsets = [0, 64], sizes = [8, 32], strides = [1, 1]} : vector<8x128xf32> to vector<8x32xf32>
    %113 = vector.extract_strided_slice %109 {offsets = [0, 96], sizes = [8, 32], strides = [1, 1]} : vector<8x128xf32> to vector<8x32xf32>
    %114 = arith.mulf %111, %76 : vector<8x32xf32>
    %115 = arith.mulf %110, %112 : vector<8x32xf32>
    %116 = arith.addf %114, %115 : vector<8x32xf32>
    %117 = math.tanh %116 : vector<8x32xf32>
    %118 = arith.mulf %113, %117 : vector<8x32xf32>
    %119 = vector.extract_strided_slice %9 {offsets = [24, 0], sizes = [8, 128], strides = [1, 1]} : vector<64x128xf32> to vector<8x128xf32>
    %cst_29 = arith.constant dense<0.000000e+00> : vector<8x128xf32>
    %120 = tpu.matmul %97, %2, %cst_29 {dimension_numbers = #tpu.dot_dimension_numbers<[1], [0], [0], [1], [0, 0, 1, 1], [], []>} : vector<8x32xf32>, vector<32x128xf32>, vector<8x128xf32> -> vector<8x128xf32>
    %121 = arith.addf %119, %120 : vector<8x128xf32>
    %122 = math.tanh %121 : vector<8x128xf32>
    %123 = arith.negf %121 : vector<8x128xf32>
    %124 = math.exp %123 : vector<8x128xf32>
    %cst_30 = arith.constant 1.000000e+00 : f32
    %125 = vector.broadcast %cst_30 : f32 to vector<8x128xf32>
    %126 = arith.addf %125, %124 : vector<8x128xf32>
    %127 = arith.divf %125, %126 : vector<8x128xf32>
    %128 = arith.select %15, %122, %127 : vector<8x128xi1>, vector<8x128xf32>
    %129 = vector.extract_strided_slice %128 {offsets = [0, 0], sizes = [8, 32], strides = [1, 1]} : vector<8x128xf32> to vector<8x32xf32>
    %130 = vector.extract_strided_slice %128 {offsets = [0, 32], sizes = [8, 32], strides = [1, 1]} : vector<8x128xf32> to vector<8x32xf32>
    %131 = vector.extract_strided_slice %128 {offsets = [0, 64], sizes = [8, 32], strides = [1, 1]} : vector<8x128xf32> to vector<8x32xf32>
    %132 = vector.extract_strided_slice %128 {offsets = [0, 96], sizes = [8, 32], strides = [1, 1]} : vector<8x128xf32> to vector<8x32xf32>
    %133 = arith.mulf %130, %95 : vector<8x32xf32>
    %134 = arith.mulf %129, %131 : vector<8x32xf32>
    %135 = arith.addf %133, %134 : vector<8x32xf32>
    %136 = math.tanh %135 : vector<8x32xf32>
    %137 = arith.mulf %132, %136 : vector<8x32xf32>
    %cst_31 = arith.constant dense<0.000000e+00> : vector<8x128xf32>
    %138 = tpu.matmul %97, %1, %cst_31 {dimension_numbers = #tpu.dot_dimension_numbers<[1], [0], [0], [1], [0, 0, 1, 1], [], []>} : vector<8x32xf32>, vector<32x128xf32>, vector<8x128xf32> -> vector<8x128xf32>
    %cst_32 = arith.constant dense<0.000000e+00> : vector<8x128xf32>
    %139 = tpu.matmul %118, %3, %cst_32 {dimension_numbers = #tpu.dot_dimension_numbers<[1], [0], [0], [1], [0, 0, 1, 1], [], []>} : vector<8x32xf32>, vector<32x128xf32>, vector<8x128xf32> -> vector<8x128xf32>
    %140 = arith.addf %138, %139 : vector<8x128xf32>
    %141 = vector.broadcast %5 : vector<1x128xf32> to vector<8x128xf32>
    %142 = arith.addf %140, %141 : vector<8x128xf32>
    %143 = math.tanh %142 : vector<8x128xf32>
    %144 = arith.negf %142 : vector<8x128xf32>
    %145 = math.exp %144 : vector<8x128xf32>
    %cst_33 = arith.constant 1.000000e+00 : f32
    %146 = vector.broadcast %cst_33 : f32 to vector<8x128xf32>
    %147 = arith.addf %146, %145 : vector<8x128xf32>
    %148 = arith.divf %146, %147 : vector<8x128xf32>
    %149 = arith.select %15, %143, %148 : vector<8x128xi1>, vector<8x128xf32>
    %150 = vector.extract_strided_slice %149 {offsets = [0, 0], sizes = [8, 32], strides = [1, 1]} : vector<8x128xf32> to vector<8x32xf32>
    %151 = vector.extract_strided_slice %149 {offsets = [0, 32], sizes = [8, 32], strides = [1, 1]} : vector<8x128xf32> to vector<8x32xf32>
    %152 = vector.extract_strided_slice %149 {offsets = [0, 64], sizes = [8, 32], strides = [1, 1]} : vector<8x128xf32> to vector<8x32xf32>
    %153 = vector.extract_strided_slice %149 {offsets = [0, 96], sizes = [8, 32], strides = [1, 1]} : vector<8x128xf32> to vector<8x32xf32>
    %154 = arith.mulf %151, %116 : vector<8x32xf32>
    %155 = arith.mulf %150, %152 : vector<8x32xf32>
    %156 = arith.addf %154, %155 : vector<8x32xf32>
    %157 = math.tanh %156 : vector<8x32xf32>
    %158 = arith.mulf %153, %157 : vector<8x32xf32>
    %159 = vector.extract_strided_slice %9 {offsets = [32, 0], sizes = [8, 128], strides = [1, 1]} : vector<64x128xf32> to vector<8x128xf32>
    %cst_34 = arith.constant dense<0.000000e+00> : vector<8x128xf32>
    %160 = tpu.matmul %137, %2, %cst_34 {dimension_numbers = #tpu.dot_dimension_numbers<[1], [0], [0], [1], [0, 0, 1, 1], [], []>} : vector<8x32xf32>, vector<32x128xf32>, vector<8x128xf32> -> vector<8x128xf32>
    %161 = arith.addf %159, %160 : vector<8x128xf32>
    %162 = math.tanh %161 : vector<8x128xf32>
    %163 = arith.negf %161 : vector<8x128xf32>
    %164 = math.exp %163 : vector<8x128xf32>
    %cst_35 = arith.constant 1.000000e+00 : f32
    %165 = vector.broadcast %cst_35 : f32 to vector<8x128xf32>
    %166 = arith.addf %165, %164 : vector<8x128xf32>
    %167 = arith.divf %165, %166 : vector<8x128xf32>
    %168 = arith.select %15, %162, %167 : vector<8x128xi1>, vector<8x128xf32>
    %169 = vector.extract_strided_slice %168 {offsets = [0, 0], sizes = [8, 32], strides = [1, 1]} : vector<8x128xf32> to vector<8x32xf32>
    %170 = vector.extract_strided_slice %168 {offsets = [0, 32], sizes = [8, 32], strides = [1, 1]} : vector<8x128xf32> to vector<8x32xf32>
    %171 = vector.extract_strided_slice %168 {offsets = [0, 64], sizes = [8, 32], strides = [1, 1]} : vector<8x128xf32> to vector<8x32xf32>
    %172 = vector.extract_strided_slice %168 {offsets = [0, 96], sizes = [8, 32], strides = [1, 1]} : vector<8x128xf32> to vector<8x32xf32>
    %173 = arith.mulf %170, %135 : vector<8x32xf32>
    %174 = arith.mulf %169, %171 : vector<8x32xf32>
    %175 = arith.addf %173, %174 : vector<8x32xf32>
    %176 = math.tanh %175 : vector<8x32xf32>
    %177 = arith.mulf %172, %176 : vector<8x32xf32>
    %cst_36 = arith.constant dense<0.000000e+00> : vector<8x128xf32>
    %178 = tpu.matmul %137, %1, %cst_36 {dimension_numbers = #tpu.dot_dimension_numbers<[1], [0], [0], [1], [0, 0, 1, 1], [], []>} : vector<8x32xf32>, vector<32x128xf32>, vector<8x128xf32> -> vector<8x128xf32>
    %cst_37 = arith.constant dense<0.000000e+00> : vector<8x128xf32>
    %179 = tpu.matmul %158, %3, %cst_37 {dimension_numbers = #tpu.dot_dimension_numbers<[1], [0], [0], [1], [0, 0, 1, 1], [], []>} : vector<8x32xf32>, vector<32x128xf32>, vector<8x128xf32> -> vector<8x128xf32>
    %180 = arith.addf %178, %179 : vector<8x128xf32>
    %181 = vector.broadcast %5 : vector<1x128xf32> to vector<8x128xf32>
    %182 = arith.addf %180, %181 : vector<8x128xf32>
    %183 = math.tanh %182 : vector<8x128xf32>
    %184 = arith.negf %182 : vector<8x128xf32>
    %185 = math.exp %184 : vector<8x128xf32>
    %cst_38 = arith.constant 1.000000e+00 : f32
    %186 = vector.broadcast %cst_38 : f32 to vector<8x128xf32>
    %187 = arith.addf %186, %185 : vector<8x128xf32>
    %188 = arith.divf %186, %187 : vector<8x128xf32>
    %189 = arith.select %15, %183, %188 : vector<8x128xi1>, vector<8x128xf32>
    %190 = vector.extract_strided_slice %189 {offsets = [0, 0], sizes = [8, 32], strides = [1, 1]} : vector<8x128xf32> to vector<8x32xf32>
    %191 = vector.extract_strided_slice %189 {offsets = [0, 32], sizes = [8, 32], strides = [1, 1]} : vector<8x128xf32> to vector<8x32xf32>
    %192 = vector.extract_strided_slice %189 {offsets = [0, 64], sizes = [8, 32], strides = [1, 1]} : vector<8x128xf32> to vector<8x32xf32>
    %193 = vector.extract_strided_slice %189 {offsets = [0, 96], sizes = [8, 32], strides = [1, 1]} : vector<8x128xf32> to vector<8x32xf32>
    %194 = arith.mulf %191, %156 : vector<8x32xf32>
    %195 = arith.mulf %190, %192 : vector<8x32xf32>
    %196 = arith.addf %194, %195 : vector<8x32xf32>
    %197 = math.tanh %196 : vector<8x32xf32>
    %198 = arith.mulf %193, %197 : vector<8x32xf32>
    %199 = vector.extract_strided_slice %9 {offsets = [40, 0], sizes = [8, 128], strides = [1, 1]} : vector<64x128xf32> to vector<8x128xf32>
    %cst_39 = arith.constant dense<0.000000e+00> : vector<8x128xf32>
    %200 = tpu.matmul %177, %2, %cst_39 {dimension_numbers = #tpu.dot_dimension_numbers<[1], [0], [0], [1], [0, 0, 1, 1], [], []>} : vector<8x32xf32>, vector<32x128xf32>, vector<8x128xf32> -> vector<8x128xf32>
    %201 = arith.addf %199, %200 : vector<8x128xf32>
    %202 = math.tanh %201 : vector<8x128xf32>
    %203 = arith.negf %201 : vector<8x128xf32>
    %204 = math.exp %203 : vector<8x128xf32>
    %cst_40 = arith.constant 1.000000e+00 : f32
    %205 = vector.broadcast %cst_40 : f32 to vector<8x128xf32>
    %206 = arith.addf %205, %204 : vector<8x128xf32>
    %207 = arith.divf %205, %206 : vector<8x128xf32>
    %208 = arith.select %15, %202, %207 : vector<8x128xi1>, vector<8x128xf32>
    %209 = vector.extract_strided_slice %208 {offsets = [0, 0], sizes = [8, 32], strides = [1, 1]} : vector<8x128xf32> to vector<8x32xf32>
    %210 = vector.extract_strided_slice %208 {offsets = [0, 32], sizes = [8, 32], strides = [1, 1]} : vector<8x128xf32> to vector<8x32xf32>
    %211 = vector.extract_strided_slice %208 {offsets = [0, 64], sizes = [8, 32], strides = [1, 1]} : vector<8x128xf32> to vector<8x32xf32>
    %212 = vector.extract_strided_slice %208 {offsets = [0, 96], sizes = [8, 32], strides = [1, 1]} : vector<8x128xf32> to vector<8x32xf32>
    %213 = arith.mulf %210, %175 : vector<8x32xf32>
    %214 = arith.mulf %209, %211 : vector<8x32xf32>
    %215 = arith.addf %213, %214 : vector<8x32xf32>
    %216 = math.tanh %215 : vector<8x32xf32>
    %217 = arith.mulf %212, %216 : vector<8x32xf32>
    %cst_41 = arith.constant dense<0.000000e+00> : vector<8x128xf32>
    %218 = tpu.matmul %177, %1, %cst_41 {dimension_numbers = #tpu.dot_dimension_numbers<[1], [0], [0], [1], [0, 0, 1, 1], [], []>} : vector<8x32xf32>, vector<32x128xf32>, vector<8x128xf32> -> vector<8x128xf32>
    %cst_42 = arith.constant dense<0.000000e+00> : vector<8x128xf32>
    %219 = tpu.matmul %198, %3, %cst_42 {dimension_numbers = #tpu.dot_dimension_numbers<[1], [0], [0], [1], [0, 0, 1, 1], [], []>} : vector<8x32xf32>, vector<32x128xf32>, vector<8x128xf32> -> vector<8x128xf32>
    %220 = arith.addf %218, %219 : vector<8x128xf32>
    %221 = vector.broadcast %5 : vector<1x128xf32> to vector<8x128xf32>
    %222 = arith.addf %220, %221 : vector<8x128xf32>
    %223 = math.tanh %222 : vector<8x128xf32>
    %224 = arith.negf %222 : vector<8x128xf32>
    %225 = math.exp %224 : vector<8x128xf32>
    %cst_43 = arith.constant 1.000000e+00 : f32
    %226 = vector.broadcast %cst_43 : f32 to vector<8x128xf32>
    %227 = arith.addf %226, %225 : vector<8x128xf32>
    %228 = arith.divf %226, %227 : vector<8x128xf32>
    %229 = arith.select %15, %223, %228 : vector<8x128xi1>, vector<8x128xf32>
    %230 = vector.extract_strided_slice %229 {offsets = [0, 0], sizes = [8, 32], strides = [1, 1]} : vector<8x128xf32> to vector<8x32xf32>
    %231 = vector.extract_strided_slice %229 {offsets = [0, 32], sizes = [8, 32], strides = [1, 1]} : vector<8x128xf32> to vector<8x32xf32>
    %232 = vector.extract_strided_slice %229 {offsets = [0, 64], sizes = [8, 32], strides = [1, 1]} : vector<8x128xf32> to vector<8x32xf32>
    %233 = vector.extract_strided_slice %229 {offsets = [0, 96], sizes = [8, 32], strides = [1, 1]} : vector<8x128xf32> to vector<8x32xf32>
    %234 = arith.mulf %231, %196 : vector<8x32xf32>
    %235 = arith.mulf %230, %232 : vector<8x32xf32>
    %236 = arith.addf %234, %235 : vector<8x32xf32>
    %237 = math.tanh %236 : vector<8x32xf32>
    %238 = arith.mulf %233, %237 : vector<8x32xf32>
    %239 = vector.extract_strided_slice %9 {offsets = [48, 0], sizes = [8, 128], strides = [1, 1]} : vector<64x128xf32> to vector<8x128xf32>
    %cst_44 = arith.constant dense<0.000000e+00> : vector<8x128xf32>
    %240 = tpu.matmul %217, %2, %cst_44 {dimension_numbers = #tpu.dot_dimension_numbers<[1], [0], [0], [1], [0, 0, 1, 1], [], []>} : vector<8x32xf32>, vector<32x128xf32>, vector<8x128xf32> -> vector<8x128xf32>
    %241 = arith.addf %239, %240 : vector<8x128xf32>
    %242 = math.tanh %241 : vector<8x128xf32>
    %243 = arith.negf %241 : vector<8x128xf32>
    %244 = math.exp %243 : vector<8x128xf32>
    %cst_45 = arith.constant 1.000000e+00 : f32
    %245 = vector.broadcast %cst_45 : f32 to vector<8x128xf32>
    %246 = arith.addf %245, %244 : vector<8x128xf32>
    %247 = arith.divf %245, %246 : vector<8x128xf32>
    %248 = arith.select %15, %242, %247 : vector<8x128xi1>, vector<8x128xf32>
    %249 = vector.extract_strided_slice %248 {offsets = [0, 0], sizes = [8, 32], strides = [1, 1]} : vector<8x128xf32> to vector<8x32xf32>
    %250 = vector.extract_strided_slice %248 {offsets = [0, 32], sizes = [8, 32], strides = [1, 1]} : vector<8x128xf32> to vector<8x32xf32>
    %251 = vector.extract_strided_slice %248 {offsets = [0, 64], sizes = [8, 32], strides = [1, 1]} : vector<8x128xf32> to vector<8x32xf32>
    %252 = vector.extract_strided_slice %248 {offsets = [0, 96], sizes = [8, 32], strides = [1, 1]} : vector<8x128xf32> to vector<8x32xf32>
    %253 = arith.mulf %250, %215 : vector<8x32xf32>
    %254 = arith.mulf %249, %251 : vector<8x32xf32>
    %255 = arith.addf %253, %254 : vector<8x32xf32>
    %256 = math.tanh %255 : vector<8x32xf32>
    %257 = arith.mulf %252, %256 : vector<8x32xf32>
    %cst_46 = arith.constant dense<0.000000e+00> : vector<8x128xf32>
    %258 = tpu.matmul %217, %1, %cst_46 {dimension_numbers = #tpu.dot_dimension_numbers<[1], [0], [0], [1], [0, 0, 1, 1], [], []>} : vector<8x32xf32>, vector<32x128xf32>, vector<8x128xf32> -> vector<8x128xf32>
    %cst_47 = arith.constant dense<0.000000e+00> : vector<8x128xf32>
    %259 = tpu.matmul %238, %3, %cst_47 {dimension_numbers = #tpu.dot_dimension_numbers<[1], [0], [0], [1], [0, 0, 1, 1], [], []>} : vector<8x32xf32>, vector<32x128xf32>, vector<8x128xf32> -> vector<8x128xf32>
    %260 = arith.addf %258, %259 : vector<8x128xf32>
    %261 = vector.broadcast %5 : vector<1x128xf32> to vector<8x128xf32>
    %262 = arith.addf %260, %261 : vector<8x128xf32>
    %263 = math.tanh %262 : vector<8x128xf32>
    %264 = arith.negf %262 : vector<8x128xf32>
    %265 = math.exp %264 : vector<8x128xf32>
    %cst_48 = arith.constant 1.000000e+00 : f32
    %266 = vector.broadcast %cst_48 : f32 to vector<8x128xf32>
    %267 = arith.addf %266, %265 : vector<8x128xf32>
    %268 = arith.divf %266, %267 : vector<8x128xf32>
    %269 = arith.select %15, %263, %268 : vector<8x128xi1>, vector<8x128xf32>
    %270 = vector.extract_strided_slice %269 {offsets = [0, 0], sizes = [8, 32], strides = [1, 1]} : vector<8x128xf32> to vector<8x32xf32>
    %271 = vector.extract_strided_slice %269 {offsets = [0, 32], sizes = [8, 32], strides = [1, 1]} : vector<8x128xf32> to vector<8x32xf32>
    %272 = vector.extract_strided_slice %269 {offsets = [0, 64], sizes = [8, 32], strides = [1, 1]} : vector<8x128xf32> to vector<8x32xf32>
    %273 = vector.extract_strided_slice %269 {offsets = [0, 96], sizes = [8, 32], strides = [1, 1]} : vector<8x128xf32> to vector<8x32xf32>
    %274 = arith.mulf %271, %236 : vector<8x32xf32>
    %275 = arith.mulf %270, %272 : vector<8x32xf32>
    %276 = arith.addf %274, %275 : vector<8x32xf32>
    %277 = math.tanh %276 : vector<8x32xf32>
    %278 = arith.mulf %273, %277 : vector<8x32xf32>
    %279 = vector.extract_strided_slice %9 {offsets = [56, 0], sizes = [8, 128], strides = [1, 1]} : vector<64x128xf32> to vector<8x128xf32>
    %cst_49 = arith.constant dense<0.000000e+00> : vector<8x128xf32>
    %280 = tpu.matmul %257, %2, %cst_49 {dimension_numbers = #tpu.dot_dimension_numbers<[1], [0], [0], [1], [0, 0, 1, 1], [], []>} : vector<8x32xf32>, vector<32x128xf32>, vector<8x128xf32> -> vector<8x128xf32>
    %281 = arith.addf %279, %280 : vector<8x128xf32>
    %282 = math.tanh %281 : vector<8x128xf32>
    %283 = arith.negf %281 : vector<8x128xf32>
    %284 = math.exp %283 : vector<8x128xf32>
    %cst_50 = arith.constant 1.000000e+00 : f32
    %285 = vector.broadcast %cst_50 : f32 to vector<8x128xf32>
    %286 = arith.addf %285, %284 : vector<8x128xf32>
    %287 = arith.divf %285, %286 : vector<8x128xf32>
    %288 = arith.select %15, %282, %287 : vector<8x128xi1>, vector<8x128xf32>
    %289 = vector.extract_strided_slice %288 {offsets = [0, 0], sizes = [8, 32], strides = [1, 1]} : vector<8x128xf32> to vector<8x32xf32>
    %290 = vector.extract_strided_slice %288 {offsets = [0, 32], sizes = [8, 32], strides = [1, 1]} : vector<8x128xf32> to vector<8x32xf32>
    %291 = vector.extract_strided_slice %288 {offsets = [0, 64], sizes = [8, 32], strides = [1, 1]} : vector<8x128xf32> to vector<8x32xf32>
    %292 = vector.extract_strided_slice %288 {offsets = [0, 96], sizes = [8, 32], strides = [1, 1]} : vector<8x128xf32> to vector<8x32xf32>
    %293 = arith.mulf %290, %255 : vector<8x32xf32>
    %294 = arith.mulf %289, %291 : vector<8x32xf32>
    %295 = arith.addf %293, %294 : vector<8x32xf32>
    %296 = math.tanh %295 : vector<8x32xf32>
    %297 = arith.mulf %292, %296 : vector<8x32xf32>
    %cst_51 = arith.constant dense<0.000000e+00> : vector<8x128xf32>
    %298 = tpu.matmul %257, %1, %cst_51 {dimension_numbers = #tpu.dot_dimension_numbers<[1], [0], [0], [1], [0, 0, 1, 1], [], []>} : vector<8x32xf32>, vector<32x128xf32>, vector<8x128xf32> -> vector<8x128xf32>
    %cst_52 = arith.constant dense<0.000000e+00> : vector<8x128xf32>
    %299 = tpu.matmul %278, %3, %cst_52 {dimension_numbers = #tpu.dot_dimension_numbers<[1], [0], [0], [1], [0, 0, 1, 1], [], []>} : vector<8x32xf32>, vector<32x128xf32>, vector<8x128xf32> -> vector<8x128xf32>
    %300 = arith.addf %298, %299 : vector<8x128xf32>
    %301 = vector.broadcast %5 : vector<1x128xf32> to vector<8x128xf32>
    %302 = arith.addf %300, %301 : vector<8x128xf32>
    %303 = math.tanh %302 : vector<8x128xf32>
    %304 = arith.negf %302 : vector<8x128xf32>
    %305 = math.exp %304 : vector<8x128xf32>
    %cst_53 = arith.constant 1.000000e+00 : f32
    %306 = vector.broadcast %cst_53 : f32 to vector<8x128xf32>
    %307 = arith.addf %306, %305 : vector<8x128xf32>
    %308 = arith.divf %306, %307 : vector<8x128xf32>
    %309 = arith.select %15, %303, %308 : vector<8x128xi1>, vector<8x128xf32>
    %310 = vector.extract_strided_slice %309 {offsets = [0, 0], sizes = [8, 32], strides = [1, 1]} : vector<8x128xf32> to vector<8x32xf32>
    %311 = vector.extract_strided_slice %309 {offsets = [0, 32], sizes = [8, 32], strides = [1, 1]} : vector<8x128xf32> to vector<8x32xf32>
    %312 = vector.extract_strided_slice %309 {offsets = [0, 64], sizes = [8, 32], strides = [1, 1]} : vector<8x128xf32> to vector<8x32xf32>
    %313 = vector.extract_strided_slice %309 {offsets = [0, 96], sizes = [8, 32], strides = [1, 1]} : vector<8x128xf32> to vector<8x32xf32>
    %314 = arith.mulf %311, %276 : vector<8x32xf32>
    %315 = arith.mulf %310, %312 : vector<8x32xf32>
    %316 = arith.addf %314, %315 : vector<8x32xf32>
    %317 = math.tanh %316 : vector<8x32xf32>
    %318 = arith.mulf %313, %317 : vector<8x32xf32>
    %cst_54 = arith.constant dense<0.000000e+00> : vector<8x128xf32>
    %319 = tpu.matmul %297, %1, %cst_54 {dimension_numbers = #tpu.dot_dimension_numbers<[1], [0], [0], [1], [0, 0, 1, 1], [], []>} : vector<8x32xf32>, vector<32x128xf32>, vector<8x128xf32> -> vector<8x128xf32>
    %cst_55 = arith.constant dense<0.000000e+00> : vector<8x128xf32>
    %320 = tpu.matmul %318, %3, %cst_55 {dimension_numbers = #tpu.dot_dimension_numbers<[1], [0], [0], [1], [0, 0, 1, 1], [], []>} : vector<8x32xf32>, vector<32x128xf32>, vector<8x128xf32> -> vector<8x128xf32>
    %321 = arith.addf %319, %320 : vector<8x128xf32>
    %322 = vector.broadcast %5 : vector<1x128xf32> to vector<8x128xf32>
    %323 = arith.addf %321, %322 : vector<8x128xf32>
    %324 = math.tanh %323 : vector<8x128xf32>
    %325 = arith.negf %323 : vector<8x128xf32>
    %326 = math.exp %325 : vector<8x128xf32>
    %cst_56 = arith.constant 1.000000e+00 : f32
    %327 = vector.broadcast %cst_56 : f32 to vector<8x128xf32>
    %328 = arith.addf %327, %326 : vector<8x128xf32>
    %329 = arith.divf %327, %328 : vector<8x128xf32>
    %330 = arith.select %15, %324, %329 : vector<8x128xi1>, vector<8x128xf32>
    %331 = vector.extract_strided_slice %330 {offsets = [0, 0], sizes = [8, 32], strides = [1, 1]} : vector<8x128xf32> to vector<8x32xf32>
    %332 = vector.extract_strided_slice %330 {offsets = [0, 32], sizes = [8, 32], strides = [1, 1]} : vector<8x128xf32> to vector<8x32xf32>
    %333 = vector.extract_strided_slice %330 {offsets = [0, 64], sizes = [8, 32], strides = [1, 1]} : vector<8x128xf32> to vector<8x32xf32>
    %334 = vector.extract_strided_slice %330 {offsets = [0, 96], sizes = [8, 32], strides = [1, 1]} : vector<8x128xf32> to vector<8x32xf32>
    %335 = arith.mulf %332, %316 : vector<8x32xf32>
    %336 = arith.mulf %331, %333 : vector<8x32xf32>
    %337 = arith.addf %335, %336 : vector<8x32xf32>
    %338 = math.tanh %337 : vector<8x32xf32>
    %339 = arith.mulf %334, %338 : vector<8x32xf32>
    %c0_57 = arith.constant 0 : index
    %c0_58 = arith.constant 0 : index
    %340 = vector.load %arg7[%c0_57, %c0_58] : memref<32x32xf32, #tpu.memory_space<vmem>>, vector<32x32xf32>
    %cst_59 = arith.constant dense<0.000000e+00> : vector<8x32xf32>
    %341 = tpu.matmul %339, %340, %cst_59 {dimension_numbers = #tpu.dot_dimension_numbers<[1], [0], [0], [1], [0, 0, 1, 1], [], []>} : vector<8x32xf32>, vector<32x32xf32>, vector<8x32xf32> -> vector<8x32xf32>
    %c0_60 = arith.constant 0 : index
    %c0_61 = arith.constant 0 : index
    %342 = vector.load %arg8[%c0_60, %c0_61] : memref<1x32xf32, #tpu.memory_space<vmem>>, vector<1x32xf32>
    %343 = vector.broadcast %342 : vector<1x32xf32> to vector<8x32xf32>
    %344 = arith.addf %341, %343 : vector<8x32xf32>
    %cst_62 = arith.constant 0.000000e+00 : f32
    %345 = vector.broadcast %cst_62 : f32 to vector<8x32xf32>
    %346 = arith.maximumf %344, %345 : vector<8x32xf32>
    %c0_63 = arith.constant 0 : index
    %c0_64 = arith.constant 0 : index
    %347 = vector.load %arg9[%c0_63, %c0_64] : memref<32x128xf32, #tpu.memory_space<vmem>>, vector<32x128xf32>
    %cst_65 = arith.constant dense<0.000000e+00> : vector<8x128xf32>
    %348 = tpu.matmul %346, %347, %cst_65 {dimension_numbers = #tpu.dot_dimension_numbers<[1], [0], [0], [1], [0, 0, 1, 1], [], []>} : vector<8x32xf32>, vector<32x128xf32>, vector<8x128xf32> -> vector<8x128xf32>
    %c0_66 = arith.constant 0 : index
    %c0_67 = arith.constant 0 : index
    %349 = vector.load %arg10[%c0_66, %c0_67] : memref<1x128xf32, #tpu.memory_space<vmem>>, vector<1x128xf32>
    %350 = vector.broadcast %349 : vector<1x128xf32> to vector<8x128xf32>
    %351 = arith.addf %348, %350 : vector<8x128xf32>
    %352 = arith.negf %351 : vector<8x128xf32>
    %353 = math.exp %352 : vector<8x128xf32>
    %cst_68 = arith.constant 1.000000e+00 : f32
    %354 = vector.broadcast %cst_68 : f32 to vector<8x128xf32>
    %355 = arith.addf %354, %353 : vector<8x128xf32>
    %356 = arith.divf %354, %355 : vector<8x128xf32>
    %c0_69 = arith.constant 0 : index
    %c0_70 = arith.constant 0 : index
    %357 = vector.load %arg11[%c0_69, %c0_70] : memref<8x128xf32, #tpu.memory_space<vmem>>, vector<8x128xf32>
    tpu.vector_store %arg11[%c0_69, %c0_70], %356 {strides = array<i32>} : memref<8x128xf32, #tpu.memory_space<vmem>>, vector<8x128xf32>,
    return
  }
}

</mosaic_0001>

<llo_original>
// kernel: lstm_model_forward.1
$region0: #{lstm_model_forward.1}
  #allocation0 [shape = 'u32[]', space=smem, size = 0x4, offset = 0x4, fixed_abs, tag = 'smem constant byte address 0x4 - core index']
  #allocation1 [shape = 'u32[144,128]{1,0:T(1,128)}', space=vmem, size = 0x12000, scoped, tag = 'internal scratch']
  %s0 = inlined_call_operand.vmem [shape: f32[64,4], index: 0, kind: input, shape index: {}]
  %s1 = inlined_call_operand.vmem [shape: f32[4,128], index: 1, kind: input, shape index: {}]
  %s2 = inlined_call_operand.vmem [shape: f32[32,128], index: 2, kind: input, shape index: {}]
  %s3 = inlined_call_operand.vmem [shape: f32[1,128], index: 3, kind: input, shape index: {}]
  %s4 = inlined_call_operand.vmem [shape: f32[32,128], index: 4, kind: input, shape index: {}]
  %s5 = inlined_call_operand.vmem [shape: f32[32,128], index: 5, kind: input, shape index: {}]
  %s6 = inlined_call_operand.vmem [shape: f32[1,128], index: 6, kind: input, shape index: {}]
  %s7 = inlined_call_operand.vmem [shape: f32[32,32], index: 7, kind: input, shape index: {}]
  %s8 = inlined_call_operand.vmem [shape: f32[1,32], index: 8, kind: input, shape index: {}]
  %s9 = inlined_call_operand.vmem [shape: f32[32,128], index: 9, kind: input, shape index: {}]
  %s10 = inlined_call_operand.vmem [shape: f32[1,128], index: 10, kind: input, shape index: {}]
  %s11 = inlined_call_operand.vmem [shape: f32[8,128], index: 11, kind: output, shape index: {}]
  %s12 = sld [smem:[#allocation0]]
  $region54: #{lstm_model_forward.1} parent=0
    _
  %s14 = ssub.s32 1, %s12
  %s15 = scalar_select 0, %s14, %s12
  // Predicated region
  $region2: #{lstm_model_forward.1} parent=0 // pred_check
    _
  $region3: #{lstm_model_forward.1} parent=0 // pred_check_branch
    %17 = sbr.rel (0) target = $region5
  $region4: #{lstm_model_forward.1} parent=0 // pred_region
    _
  $region5: #{lstm_model_forward.1} parent=0 // pred_fallthru
    _
  // Predicated region
  $region6: #{lstm_model_forward.1} parent=0 // pred_check
    _
  $region7: #{lstm_model_forward.1} parent=0 // pred_check_branch
    %19 = sbr.rel (0) target = $region9
  $region8: #{lstm_model_forward.1} parent=0 // pred_region
    _
  $region9: #{lstm_model_forward.1} parent=0 // pred_fallthru
    _
  // Predicated region
  $region10: #{lstm_model_forward.1} parent=0 // pred_check
    _
  $region11: #{lstm_model_forward.1} parent=0 // pred_check_branch
    %21 = sbr.rel (0) target = $region13
  $region12: #{lstm_model_forward.1} parent=0 // pred_region
    _
  $region13: #{lstm_model_forward.1} parent=0 // pred_fallthru
    _
  // Predicated region
  $region14: #{lstm_model_forward.1} parent=0 // pred_check
    _
  $region15: #{lstm_model_forward.1} parent=0 // pred_check_branch
    %23 = sbr.rel (0) target = $region17
  $region16: #{lstm_model_forward.1} parent=0 // pred_region
    _
  $region17: #{lstm_model_forward.1} parent=0 // pred_fallthru
    _
  // Predicated region
  $region18: #{lstm_model_forward.1} parent=0 // pred_check
    _
  $region19: #{lstm_model_forward.1} parent=0 // pred_check_branch
    %25 = sbr.rel (0) target = $region21
  $region20: #{lstm_model_forward.1} parent=0 // pred_region
    _
  $region21: #{lstm_model_forward.1} parent=0 // pred_fallthru
    _
  // Predicated region
  $region22: #{lstm_model_forward.1} parent=0 // pred_check
    _
  $region23: #{lstm_model_forward.1} parent=0 // pred_check_branch
    %27 = sbr.rel (0) target = $region25
  $region24: #{lstm_model_forward.1} parent=0 // pred_region
    _
  $region25: #{lstm_model_forward.1} parent=0 // pred_fallthru
    _
  // Predicated region
  $region26: #{lstm_model_forward.1} parent=0 // pred_check
    _
  $region27: #{lstm_model_forward.1} parent=0 // pred_check_branch
    %29 = sbr.rel (0) target = $region29
  $region28: #{lstm_model_forward.1} parent=0 // pred_region
    _
  $region29: #{lstm_model_forward.1} parent=0 // pred_fallthru
    _
  // Predicated region
  $region30: #{lstm_model_forward.1} parent=0 // pred_check
    _
  $region31: #{lstm_model_forward.1} parent=0 // pred_check_branch
    %31 = sbr.rel (0) target = $region33
  $region32: #{lstm_model_forward.1} parent=0 // pred_region
    _
  $region33: #{lstm_model_forward.1} parent=0 // pred_fallthru
    _
  // Predicated region
  $region34: #{lstm_model_forward.1} parent=0 // pred_check
    _
  $region35: #{lstm_model_forward.1} parent=0 // pred_check_branch
    %33 = sbr.rel (0) target = $region37
  $region36: #{lstm_model_forward.1} parent=0 // pred_region
    _
  $region37: #{lstm_model_forward.1} parent=0 // pred_fallthru
    _
  // Predicated region
  $region38: #{lstm_model_forward.1} parent=0 // pred_check
    _
  $region39: #{lstm_model_forward.1} parent=0 // pred_check_branch
    %35 = sbr.rel (0) target = $region41
  $region40: #{lstm_model_forward.1} parent=0 // pred_region
    _
  $region41: #{lstm_model_forward.1} parent=0 // pred_fallthru
    _
  // Predicated region
  $region42: #{lstm_model_forward.1} parent=0 // pred_check
    _
  $region43: #{lstm_model_forward.1} parent=0 // pred_check_branch
    %37 = sbr.rel (0) target = $region45
  $region44: #{lstm_model_forward.1} parent=0 // pred_region
    _
  $region45: #{lstm_model_forward.1} parent=0 // pred_fallthru
    _
  %v38 = vld [vmem:[%s1] sm:$0xf]
  %v39 = vld [vmem:[%s4] sm:$0xff]
  %v40 = vld [vmem:[%s4 + $0x8] sm:$0xff]
  %v41 = vld [vmem:[%s4 + $0x10] sm:$0xff]
  %v42 = vld [vmem:[%s4 + $0x18] sm:$0xff]
  %v43 = vld [vmem:[%s2] sm:$0xff]
  %v44 = vld [vmem:[%s2 + $0x8] sm:$0xff]
  %v45 = vld [vmem:[%s2 + $0x10] sm:$0xff]
  %v46 = vld [vmem:[%s2 + $0x18] sm:$0xff]
  %v47 = vld [vmem:[%s5] sm:$0xff]
  %v48 = vld [vmem:[%s5 + $0x8] sm:$0xff]
  %v49 = vld [vmem:[%s5 + $0x10] sm:$0xff]
  %v50 = vld [vmem:[%s5 + $0x18] sm:$0xff]
  %v51 = vld [vmem:[%s3] sm:$0x1]
  %v52 = vld [vmem:[%s6] sm:$0x1]
  %v53 = vld [vmem:[%s0] sm:$0xff]
  %v54 = vld [vmem:[%s0 + $0x8] sm:$0xff]
  %v55 = vld [vmem:[%s0 + $0x10] sm:$0xff]
  %v56 = vld [vmem:[%s0 + $0x18] sm:$0xff]
  %v57 = vld [vmem:[%s0 + $0x20] sm:$0xff]
  %v58 = vld [vmem:[%s0 + $0x28] sm:$0xff]
  %v59 = vld [vmem:[%s0 + $0x30] sm:$0xff]
  %v60 = vld [vmem:[%s0 + $0x38] sm:$0xff]
  %v62 = vlaneseq
  %v63 = vshrl.u32 %v62, 7
  %v64 = vsub.s32 0, %v63
  %v65 = vrot.slane %v51, %v64
  %vm67 = vcmask 31744
  %v69 = vsel %vm67, %v53, 0
  %v72 = vsel %vm67, %v54, 0
  %v75 = vsel %vm67, %v55, 0
  %v78 = vsel %vm67, %v56, 0
  %v81 = vsel %vm67, %v57, 0
  %v84 = vsel %vm67, %v58, 0
  %v87 = vsel %vm67, %v59, 0
  %v90 = vsel %vm67, %v60, 0
  %vm92 = vcmask 1043456
  %v94 = vsel %vm92, %v38, 0
  %96 = vmatprep.subr.mxu0 0.0
  %97 = vmatpush1.msra.mxu0 %v94
  %98 = vmatprep.subr.mxu0 0.0
  %99 = vmatpush1.msra.mxu0 0.0
  %100 = vmatprep.subr.mxu0 0.0
  %101 = vmatpush1.msra.mxu0 0.0
  %102 = vmatprep.subr.mxu0 0.0
  %103 = vmatpush1.msra.mxu0 0.0
  %104 = vmatprep.subr.mxu0 0.0
  %105 = vmatpush1.msra.mxu0 0.0
  %106 = vmatprep.subr.mxu0 0.0
  %107 = vmatpush1.msra.mxu0 0.0
  %108 = vmatprep.subr.mxu0 0.0
  %109 = vmatpush1.msra.mxu0 0.0
  %110 = vmatprep.subr.mxu0 0.0
  %111 = vmatpush1.msra.mxu0 0.0
  %112 = vmatprep.subr.mxu0 0.0
  %113 = vmatpush1.msra.mxu0 0.0
  %114 = vmatprep.subr.mxu0 0.0
  %115 = vmatpush1.msra.mxu0 0.0
  %116 = vmatprep.subr.mxu0 0.0
  %117 = vmatpush1.msra.mxu0 0.0
  %118 = vmatprep.subr.mxu0 0.0
  %119 = vmatpush1.msra.mxu0 0.0
  %120 = vmatprep.subr.mxu0 0.0
  %121 = vmatpush1.msra.mxu0 0.0
  %122 = vmatprep.subr.mxu0 0.0
  %123 = vmatpush1.msra.mxu0 0.0
  %124 = vmatprep.subr.mxu0 0.0
  %125 = vmatpush1.msra.mxu0 0.0
  %126 = vmatprep.subr.mxu0 0.0
  %127 = vmatpush1.msra.mxu0 0.0
  %128 = vmatprep.subr.mxu0 0.0
  %129 = vmatpush1.msra.mxu0 0.0
  %130 = vmatprep.subr.mxu0 0.0
  %131 = vmatpush1.msra.mxu0 0.0
  %132 = vmatprep.subr.mxu0 0.0
  %133 = vmatpush1.msra.mxu0 0.0
  %134 = vmatprep.subr.mxu0 0.0
  %135 = vmatpush1.msra.mxu0 0.0
  %136 = vmatprep.subr.mxu0 0.0
  %137 = vmatpush1.msra.mxu0 0.0
  %138 = vmatprep.subr.mxu0 0.0
  %139 = vmatpush1.msra.mxu0 0.0
  %140 = vmatprep.subr.mxu0 0.0
  %141 = vmatpush1.msra.mxu0 0.0
  %142 = vmatprep.subr.mxu0 0.0
  %143 = vmatpush1.msra.mxu0 0.0
  %144 = vmatprep.subr.mxu0 0.0
  %145 = vmatpush1.msra.mxu0 0.0
  %146 = vmatprep.subr.mxu0 0.0
  %147 = vmatpush1.msra.mxu0 0.0
  %148 = vmatprep.subr.mxu0 0.0
  %149 = vmatpush1.msra.mxu0 0.0
  %150 = vmatprep.subr.mxu0 0.0
  %151 = vmatpush1.msra.mxu0 0.0
  %152 = vmatprep.subr.mxu0 0.0
  %153 = vmatpush1.msra.mxu0 0.0
  %154 = vmatprep.subr.mxu0 0.0
  %155 = vmatpush1.msra.mxu0 0.0
  %156 = vmatprep.subr.mxu0 0.0
  %157 = vmatpush1.msra.mxu0 0.0
  %158 = vmatprep.subr.mxu0 0.0
  %159 = vmatpush1.msra.mxu0 0.0
  %160 = vmatprep.mubr.f32.mxu0 0.0
  %161 = vmatmul.mubr.f32.gmra.mrb[0].mxu0 %v69
  %v162 = vpop.f32.mrb[0].mxu0
  %v163 = vadd.f32 %v65, %v162
  %v164 = vpop.f32.mrb[0].mxu0
  %165 = vmatprep.mubr.f32.mxu0 0.0
  %166 = vmatmul.mubr.f32.gmra.mrb[0].mxu0 %v72
  %v167 = vpop.f32.mrb[0].mxu0
  %v168 = vadd.f32 %v65, %v167
  %v169 = vpop.f32.mrb[0].mxu0
  %170 = vmatprep.mubr.f32.mxu0 0.0
  %171 = vmatmul.mubr.f32.gmra.mrb[0].mxu0 %v75
  %v172 = vpop.f32.mrb[0].mxu0
  %v173 = vadd.f32 %v65, %v172
  %v174 = vpop.f32.mrb[0].mxu0
  %175 = vmatprep.mubr.f32.mxu0 0.0
  %176 = vmatmul.mubr.f32.gmra.mrb[0].mxu0 %v78
  %v177 = vpop.f32.mrb[0].mxu0
  %v178 = vadd.f32 %v65, %v177
  %v179 = vpop.f32.mrb[0].mxu0
  %180 = vmatprep.mubr.f32.mxu0 0.0
  %181 = vmatmul.mubr.f32.gmra.mrb[0].mxu0 %v81
  %v182 = vpop.f32.mrb[0].mxu0
  %v183 = vadd.f32 %v65, %v182
  %v184 = vpop.f32.mrb[0].mxu0
  %185 = vmatprep.mubr.f32.mxu0 0.0
  %186 = vmatmul.mubr.f32.gmra.mrb[0].mxu0 %v84
  %v187 = vpop.f32.mrb[0].mxu0
  %v188 = vadd.f32 %v65, %v187
  %v189 = vpop.f32.mrb[0].mxu0
  %190 = vmatprep.mubr.f32.mxu0 0.0
  %191 = vmatmul.mubr.f32.gmra.mrb[0].mxu0 %v87
  %v192 = vpop.f32.mrb[0].mxu0
  %v193 = vadd.f32 %v65, %v192
  %v194 = vpop.f32.mrb[0].mxu0
  %195 = vmatprep.mubr.f32.mxu0 0.0
  %196 = vmatmul.mubr.f32.gmra.mrb[0].mxu0 %v90
  %v197 = vpop.f32.mrb[0].mxu0
  %v198 = vadd.f32 %v65, %v197
  %v199 = vpop.f32.mrb[0].mxu0
  %200 = vdwg.mxu0
  %v201 = vlaneseq
  %v202 = vand.u32 %v201, 127
  %vm203 = vcmp.ge.s32.totalorder %v202, 64
  %vm204 = vcmp.lt.s32.totalorder %v202, 96
  %vm205 = vmand %vm203, %vm204
  %vm206 = vcmask 261120
  %v208 = vsel %vm206, 0.0, 0
  %210 = vmatprep.subr.mxu0 0.0
  %211 = vmatpush1.msra.mxu0 %v43
  %212 = vmatprep.subr.mxu0 0.0
  %213 = vmatpush1.msra.mxu0 %v44
  %214 = vmatprep.subr.mxu0 0.0
  %215 = vmatpush1.msra.mxu0 %v45
  %216 = vmatprep.subr.mxu0 0.0
  %217 = vmatpush1.msra.mxu0 %v46
  %218 = vmatprep.subr.mxu0 0.0
  %219 = vmatpush1.msra.mxu0 0.0
  %220 = vmatprep.subr.mxu0 0.0
  %221 = vmatpush1.msra.mxu0 0.0
  %222 = vmatprep.subr.mxu0 0.0
  %223 = vmatpush1.msra.mxu0 0.0
  %224 = vmatprep.subr.mxu0 0.0
  %225 = vmatpush1.msra.mxu0 0.0
  %226 = vmatprep.subr.mxu0 0.0
  %227 = vmatpush1.msra.mxu0 0.0
  %228 = vmatprep.subr.mxu0 0.0
  %229 = vmatpush1.msra.mxu0 0.0
  %230 = vmatprep.subr.mxu0 0.0
  %231 = vmatpush1.msra.mxu0 0.0
  %232 = vmatprep.subr.mxu0 0.0
  %233 = vmatpush1.msra.mxu0 0.0
  %234 = vmatprep.subr.mxu0 0.0
  %235 = vmatpush1.msra.mxu0 0.0
  %236 = vmatprep.subr.mxu0 0.0
  %237 = vmatpush1.msra.mxu0 0.0
  %238 = vmatprep.subr.mxu0 0.0
  %239 = vmatpush1.msra.mxu0 0.0
  %240 = vmatprep.subr.mxu0 0.0
  %241 = vmatpush1.msra.mxu0 0.0
  %242 = vmatprep.subr.mxu0 0.0
  %243 = vmatpush1.msra.mxu0 0.0
  %244 = vmatprep.subr.mxu0 0.0
  %245 = vmatpush1.msra.mxu0 0.0
  %246 = vmatprep.subr.mxu0 0.0
  %247 = vmatpush1.msra.mxu0 0.0
  %248 = vmatprep.subr.mxu0 0.0
  %249 = vmatpush1.msra.mxu0 0.0
  %250 = vmatprep.subr.mxu0 0.0
  %251 = vmatpush1.msra.mxu0 0.0
  %252 = vmatprep.subr.mxu0 0.0
  %253 = vmatpush1.msra.mxu0 0.0
  %254 = vmatprep.subr.mxu0 0.0
  %255 = vmatpush1.msra.mxu0 0.0
  %256 = vmatprep.subr.mxu0 0.0
  %257 = vmatpush1.msra.mxu0 0.0
  %258 = vmatprep.subr.mxu0 0.0
  %259 = vmatpush1.msra.mxu0 0.0
  %260 = vmatprep.subr.mxu0 0.0
  %261 = vmatpush1.msra.mxu0 0.0
  %262 = vmatprep.subr.mxu0 0.0
  %263 = vmatpush1.msra.mxu0 0.0
  %264 = vmatprep.subr.mxu0 0.0
  %265 = vmatpush1.msra.mxu0 0.0
  %266 = vmatprep.subr.mxu0 0.0
  %267 = vmatpush1.msra.mxu0 0.0
  %268 = vmatprep.subr.mxu0 0.0
  %269 = vmatpush1.msra.mxu0 0.0
  %270 = vmatprep.subr.mxu0 0.0
  %271 = vmatpush1.msra.mxu0 0.0
  %272 = vmatprep.subr.mxu0 0.0
  %273 = vmatpush1.msra.mxu0 0.0
  %274 = vmatprep.mubr.f32.mxu0 0.0
  %275 = vmatmul.mubr.f32.gmra.mrb[0].mxu0 %v208
  %v276 = vpop.f32.mrb[0].mxu0
  %v277 = vadd.f32 0.0, %v276
  %v278 = vpop.f32.mrb[0].mxu0
  %279 = vdwg.mxu0
  %v280 = vadd.f32 %v163, %v277
  %v281 = vtanh.pop %v280
  %v282 = vxor.u32 %v280, 2147483648
  %v283 = vmul.f32 %v282, 1.442695
  %v284 = vpow.pop %v283
  %v285 = vadd.f32 %v284, 1.0
  %v286 = vrcp.pop %v285
  %v287 = vmul.f32 1.0, %v286
  %v288 = vsel %vm205, %v281, %v287
  %v289 = vmul.f32 %v288, 0.0
  %291 = vrot.lane.b32.xlu0 %v288, 64
  %v292 = vpop.permute.xlu0 %291
  %v294 = vmul.f32 %v288, %v292
  %296 = vrot.lane.b32.xlu0 %v294, 32
  %v297 = vpop.permute.xlu0 %296
  %v299 = vadd.f32 %v289, %v297
  %v300 = vtanh.pop %v299
  %302 = vrot.lane.b32.xlu0 %v300, 64
  %v303 = vpop.permute.xlu0 %302
  %v305 = vmul.f32 %v288, %v303
  %307 = vrot.lane.b32.xlu0 %v305, 32
  %v308 = vpop.permute.xlu0 %307
  %v309 = vsel %vm206, %v308, 0
  %311 = vmatprep.subr.mxu0 0.0
  %312 = vmatpush1.msra.mxu0 %v43
  %313 = vmatprep.subr.mxu0 0.0
  %314 = vmatpush1.msra.mxu0 %v44
  %315 = vmatprep.subr.mxu0 0.0
  %316 = vmatpush1.msra.mxu0 %v45
  %317 = vmatprep.subr.mxu0 0.0
  %318 = vmatpush1.msra.mxu0 %v46
  %319 = vmatprep.subr.mxu0 0.0
  %320 = vmatpush1.msra.mxu0 0.0
  %321 = vmatprep.subr.mxu0 0.0
  %322 = vmatpush1.msra.mxu0 0.0
  %323 = vmatprep.subr.mxu0 0.0
  %324 = vmatpush1.msra.mxu0 0.0
  %325 = vmatprep.subr.mxu0 0.0
  %326 = vmatpush1.msra.mxu0 0.0
  %327 = vmatprep.subr.mxu0 0.0
  %328 = vmatpush1.msra.mxu0 0.0
  %329 = vmatprep.subr.mxu0 0.0
  %330 = vmatpush1.msra.mxu0 0.0
  %331 = vmatprep.subr.mxu0 0.0
  %332 = vmatpush1.msra.mxu0 0.0
  %333 = vmatprep.subr.mxu0 0.0
  %334 = vmatpush1.msra.mxu0 0.0
  %335 = vmatprep.subr.mxu0 0.0
  %336 = vmatpush1.msra.mxu0 0.0
  %337 = vmatprep.subr.mxu0 0.0
  %338 = vmatpush1.msra.mxu0 0.0
  %339 = vmatprep.subr.mxu0 0.0
  %340 = vmatpush1.msra.mxu0 0.0
  %341 = vmatprep.subr.mxu0 0.0
  %342 = vmatpush1.msra.mxu0 0.0
  %343 = vmatprep.subr.mxu0 0.0
  %344 = vmatpush1.msra.mxu0 0.0
  %345 = vmatprep.subr.mxu0 0.0
  %346 = vmatpush1.msra.mxu0 0.0
  %347 = vmatprep.subr.mxu0 0.0
  %348 = vmatpush1.msra.mxu0 0.0
  %349 = vmatprep.subr.mxu0 0.0
  %350 = vmatpush1.msra.mxu0 0.0
  %351 = vmatprep.subr.mxu0 0.0
  %352 = vmatpush1.msra.mxu0 0.0
  %353 = vmatprep.subr.mxu0 0.0
  %354 = vmatpush1.msra.mxu0 0.0
  %355 = vmatprep.subr.mxu0 0.0
  %356 = vmatpush1.msra.mxu0 0.0
  %357 = vmatprep.subr.mxu0 0.0
  %358 = vmatpush1.msra.mxu0 0.0
  %359 = vmatprep.subr.mxu0 0.0
  %360 = vmatpush1.msra.mxu0 0.0
  %361 = vmatprep.subr.mxu0 0.0
  %362 = vmatpush1.msra.mxu0 0.0
  %363 = vmatprep.subr.mxu0 0.0
  %364 = vmatpush1.msra.mxu0 0.0
  %365 = vmatprep.subr.mxu0 0.0
  %366 = vmatpush1.msra.mxu0 0.0
  %367 = vmatprep.subr.mxu0 0.0
  %368 = vmatpush1.msra.mxu0 0.0
  %369 = vmatprep.subr.mxu0 0.0
  %370 = vmatpush1.msra.mxu0 0.0
  %371 = vmatprep.subr.mxu0 0.0
  %372 = vmatpush1.msra.mxu0 0.0
  %373 = vmatprep.subr.mxu0 0.0
  %374 = vmatpush1.msra.mxu0 0.0
  %375 = vmatprep.mubr.f32.mxu0 0.0
  %376 = vmatmul.mubr.f32.gmra.mrb[0].mxu0 %v309
  %v377 = vpop.f32.mrb[0].mxu0
  %v378 = vadd.f32 0.0, %v377
  %v379 = vpop.f32.mrb[0].mxu0
  %380 = vdwg.mxu0
  %v381 = vadd.f32 %v168, %v378
  %v382 = vtanh.pop %v381
  %v383 = vxor.u32 %v381, 2147483648
  %v384 = vmul.f32 %v383, 1.442695
  %v385 = vpow.pop %v384
  %v386 = vadd.f32 %v385, 1.0
  %v387 = vrcp.pop %v386
  %v388 = vmul.f32 1.0, %v387
  %v389 = vsel %vm205, %v382, %v388
  %v390 = vmul.f32 %v389, %v299
  %392 = vrot.lane.b32.xlu0 %v389, 64
  %v393 = vpop.permute.xlu0 %392
  %v395 = vmul.f32 %v389, %v393
  %397 = vrot.lane.b32.xlu0 %v395, 32
  %v398 = vpop.permute.xlu0 %397
  %v400 = vadd.f32 %v390, %v398
  %v401 = vtanh.pop %v400
  %403 = vrot.lane.b32.xlu0 %v401, 64
  %v404 = vpop.permute.xlu0 %403
  %v406 = vmul.f32 %v389, %v404
  %407 = vmatprep.subr.mxu0 0.0
  %408 = vmatpush1.msra.mxu0 %v47
  %409 = vmatprep.subr.mxu0 0.0
  %410 = vmatpush1.msra.mxu0 %v48
  %411 = vmatprep.subr.mxu0 0.0
  %412 = vmatpush1.msra.mxu0 %v49
  %413 = vmatprep.subr.mxu0 0.0
  %414 = vmatpush1.msra.mxu0 %v50
  %415 = vmatprep.subr.mxu0 0.0
  %416 = vmatpush1.msra.mxu0 0.0
  %417 = vmatprep.subr.mxu0 0.0
  %418 = vmatpush1.msra.mxu0 0.0
  %419 = vmatprep.subr.mxu0 0.0
  %420 = vmatpush1.msra.mxu0 0.0
  %421 = vmatprep.subr.mxu0 0.0
  %422 = vmatpush1.msra.mxu0 0.0
  %423 = vmatprep.subr.mxu0 0.0
  %424 = vmatpush1.msra.mxu0 0.0
  %425 = vmatprep.subr.mxu0 0.0
  %426 = vmatpush1.msra.mxu0 0.0
  %427 = vmatprep.subr.mxu0 0.0
  %428 = vmatpush1.msra.mxu0 0.0
  %429 = vmatprep.subr.mxu0 0.0
  %430 = vmatpush1.msra.mxu0 0.0
  %431 = vmatprep.subr.mxu0 0.0
  %432 = vmatpush1.msra.mxu0 0.0
  %433 = vmatprep.subr.mxu0 0.0
  %434 = vmatpush1.msra.mxu0 0.0
  %435 = vmatprep.subr.mxu0 0.0
  %436 = vmatpush1.msra.mxu0 0.0
  %437 = vmatprep.subr.mxu0 0.0
  %438 = vmatpush1.msra.mxu0 0.0
  %439 = vmatprep.subr.mxu0 0.0
  %440 = vmatpush1.msra.mxu0 0.0
  %441 = vmatprep.subr.mxu0 0.0
  %442 = vmatpush1.msra.mxu0 0.0
  %443 = vmatprep.subr.mxu0 0.0
  %444 = vmatpush1.msra.mxu0 0.0
  %445 = vmatprep.subr.mxu0 0.0
  %446 = vmatpush1.msra.mxu0 0.0
  %447 = vmatprep.subr.mxu0 0.0
  %448 = vmatpush1.msra.mxu0 0.0
  %449 = vmatprep.subr.mxu0 0.0
  %450 = vmatpush1.msra.mxu0 0.0
  %451 = vmatprep.subr.mxu0 0.0
  %452 = vmatpush1.msra.mxu0 0.0
  %453 = vmatprep.subr.mxu0 0.0
  %454 = vmatpush1.msra.mxu0 0.0
  %455 = vmatprep.subr.mxu0 0.0
  %456 = vmatpush1.msra.mxu0 0.0
  %457 = vmatprep.subr.mxu0 0.0
  %458 = vmatpush1.msra.mxu0 0.0
  %459 = vmatprep.subr.mxu0 0.0
  %460 = vmatpush1.msra.mxu0 0.0
  %461 = vmatprep.subr.mxu0 0.0
  %462 = vmatpush1.msra.mxu0 0.0
  %463 = vmatprep.subr.mxu0 0.0
  %464 = vmatpush1.msra.mxu0 0.0
  %465 = vmatprep.subr.mxu0 0.0
  %466 = vmatpush1.msra.mxu0 0.0
  %467 = vmatprep.subr.mxu0 0.0
  %468 = vmatpush1.msra.mxu0 0.0
  %469 = vmatprep.subr.mxu0 0.0
  %470 = vmatpush1.msra.mxu0 0.0
  %471 = vmatprep.mubr.f32.mxu0 0.0
  %472 = vmatmul.mubr.f32.gmra.mrb[0].mxu0 %v208
  %v473 = vpop.f32.mrb[0].mxu0
  %v474 = vadd.f32 0.0, %v473
  %v475 = vpop.f32.mrb[0].mxu0
  %476 = vdwg.mxu0
  %477 = vmatprep.subr.mxu0 0.0
  %478 = vmatpush1.msra.mxu0 %v39
  %479 = vmatprep.subr.mxu0 0.0
  %480 = vmatpush1.msra.mxu0 %v40
  %481 = vmatprep.subr.mxu0 0.0
  %482 = vmatpush1.msra.mxu0 %v41
  %483 = vmatprep.subr.mxu0 0.0
  %484 = vmatpush1.msra.mxu0 %v42
  %485 = vmatprep.subr.mxu0 0.0
  %486 = vmatpush1.msra.mxu0 0.0
  %487 = vmatprep.subr.mxu0 0.0
  %488 = vmatpush1.msra.mxu0 0.0
  %489 = vmatprep.subr.mxu0 0.0
  %490 = vmatpush1.msra.mxu0 0.0
  %491 = vmatprep.subr.mxu0 0.0
  %492 = vmatpush1.msra.mxu0 0.0
  %493 = vmatprep.subr.mxu0 0.0
  %494 = vmatpush1.msra.mxu0 0.0
  %495 = vmatprep.subr.mxu0 0.0
  %496 = vmatpush1.msra.mxu0 0.0
  %497 = vmatprep.subr.mxu0 0.0
  %498 = vmatpush1.msra.mxu0 0.0
  %499 = vmatprep.subr.mxu0 0.0
  %500 = vmatpush1.msra.mxu0 0.0
  %501 = vmatprep.subr.mxu0 0.0
  %502 = vmatpush1.msra.mxu0 0.0
  %503 = vmatprep.subr.mxu0 0.0
  %504 = vmatpush1.msra.mxu0 0.0
  %505 = vmatprep.subr.mxu0 0.0
  %506 = vmatpush1.msra.mxu0 0.0
  %507 = vmatprep.subr.mxu0 0.0
  %508 = vmatpush1.msra.mxu0 0.0
  %509 = vmatprep.subr.mxu0 0.0
  %510 = vmatpush1.msra.mxu0 0.0
  %511 = vmatprep.subr.mxu0 0.0
  %512 = vmatpush1.msra.mxu0 0.0
  %513 = vmatprep.subr.mxu0 0.0
  %514 = vmatpush1.msra.mxu0 0.0
  %515 = vmatprep.subr.mxu0 0.0
  %516 = vmatpush1.msra.mxu0 0.0
  %517 = vmatprep.subr.mxu0 0.0
  %518 = vmatpush1.msra.mxu0 0.0
  %519 = vmatprep.subr.mxu0 0.0
  %520 = vmatpush1.msra.mxu0 0.0
  %521 = vmatprep.subr.mxu0 0.0
  %522 = vmatpush1.msra.mxu0 0.0
  %523 = vmatprep.subr.mxu0 0.0
  %524 = vmatpush1.msra.mxu0 0.0
  %525 = vmatprep.subr.mxu0 0.0
  %526 = vmatpush1.msra.mxu0 0.0
  %527 = vmatprep.subr.mxu0 0.0
  %528 = vmatpush1.msra.mxu0 0.0
  %529 = vmatprep.subr.mxu0 0.0
  %530 = vmatpush1.msra.mxu0 0.0
  %531 = vmatprep.subr.mxu0 0.0
  %532 = vmatpush1.msra.mxu0 0.0
  %533 = vmatprep.subr.mxu0 0.0
  %534 = vmatpush1.msra.mxu0 0.0
  %535 = vmatprep.subr.mxu0 0.0
  %536 = vmatpush1.msra.mxu0 0.0
  %537 = vmatprep.subr.mxu0 0.0
  %538 = vmatpush1.msra.mxu0 0.0
  %539 = vmatprep.subr.mxu0 0.0
  %540 = vmatpush1.msra.mxu0 0.0
  %541 = vmatprep.mubr.f32.mxu0 0.0
  %542 = vmatmul.mubr.f32.gmra.mrb[0].mxu0 %v309
  %v543 = vpop.f32.mrb[0].mxu0
  %v544 = vadd.f32 %v474, %v543
  %v545 = vpop.f32.mrb[0].mxu0
  %546 = vdwg.mxu0
  %v548 = vlaneseq
  %v549 = vshrl.u32 %v548, 7
  %v550 = vsub.s32 0, %v549
  %v551 = vrot.slane %v52, %v550
  %v553 = vadd.f32 %v544, %v551
  %v554 = vtanh.pop %v553
  %v555 = vxor.u32 %v553, 2147483648
  %v556 = vmul.f32 %v555, 1.442695
  %v557 = vpow.pop %v556
  %v558 = vadd.f32 %v557, 1.0
  %v559 = vrcp.pop %v558
  %v560 = vmul.f32 1.0, %v559
  %v561 = vsel %vm205, %v554, %v560
  %v562 = vmul.f32 %v561, 0.0
  %564 = vrot.lane.b32.xlu0 %v561, 64
  %v565 = vpop.permute.xlu0 %564
  %v567 = vmul.f32 %v561, %v565
  %569 = vrot.lane.b32.xlu0 %v567, 32
  %v570 = vpop.permute.xlu0 %569
  %v572 = vadd.f32 %v562, %v570
  %v573 = vtanh.pop %v572
  %575 = vrot.lane.b32.xlu0 %v573, 64
  %v576 = vpop.permute.xlu0 %575
  %v578 = vmul.f32 %v561, %v576
  %580 = vrot.lane.b32.xlu0 %v406, 32
  %v581 = vpop.permute.xlu0 %580
  %v582 = vsel %vm206, %v581, 0
  %584 = vmatprep.subr.mxu0 0.0
  %585 = vmatpush1.msra.mxu0 %v43
  %586 = vmatprep.subr.mxu0 0.0
  %587 = vmatpush1.msra.mxu0 %v44
  %588 = vmatprep.subr.mxu0 0.0
  %589 = vmatpush1.msra.mxu0 %v45
  %590 = vmatprep.subr.mxu0 0.0
  %591 = vmatpush1.msra.mxu0 %v46
  %592 = vmatprep.subr.mxu0 0.0
  %593 = vmatpush1.msra.mxu0 0.0
  %594 = vmatprep.subr.mxu0 0.0
  %595 = vmatpush1.msra.mxu0 0.0
  %596 = vmatprep.subr.mxu0 0.0
  %597 = vmatpush1.msra.mxu0 0.0
  %598 = vmatprep.subr.mxu0 0.0
  %599 = vmatpush1.msra.mxu0 0.0
  %600 = vmatprep.subr.mxu0 0.0
  %601 = vmatpush1.msra.mxu0 0.0
  %602 = vmatprep.subr.mxu0 0.0
  %603 = vmatpush1.msra.mxu0 0.0
  %604 = vmatprep.subr.mxu0 0.0
  %605 = vmatpush1.msra.mxu0 0.0
  %606 = vmatprep.subr.mxu0 0.0
  %607 = vmatpush1.msra.mxu0 0.0
  %608 = vmatprep.subr.mxu0 0.0
  %609 = vmatpush1.msra.mxu0 0.0
  %610 = vmatprep.subr.mxu0 0.0
  %611 = vmatpush1.msra.mxu0 0.0
  %612 = vmatprep.subr.mxu0 0.0
  %613 = vmatpush1.msra.mxu0 0.0
  %614 = vmatprep.subr.mxu0 0.0
  %615 = vmatpush1.msra.mxu0 0.0
  %616 = vmatprep.subr.mxu0 0.0
  %617 = vmatpush1.msra.mxu0 0.0
  %618 = vmatprep.subr.mxu0 0.0
  %619 = vmatpush1.msra.mxu0 0.0
  %620 = vmatprep.subr.mxu0 0.0
  %621 = vmatpush1.msra.mxu0 0.0
  %622 = vmatprep.subr.mxu0 0.0
  %623 = vmatpush1.msra.mxu0 0.0
  %624 = vmatprep.subr.mxu0 0.0
  %625 = vmatpush1.msra.mxu0 0.0
  %626 = vmatprep.subr.mxu0 0.0
  %627 = vmatpush1.msra.mxu0 0.0
  %628 = vmatprep.subr.mxu0 0.0
  %629 = vmatpush1.msra.mxu0 0.0
  %630 = vmatprep.subr.mxu0 0.0
  %631 = vmatpush1.msra.mxu0 0.0
  %632 = vmatprep.subr.mxu0 0.0
  %633 = vmatpush1.msra.mxu0 0.0
  %634 = vmatprep.subr.mxu0 0.0
  %635 = vmatpush1.msra.mxu0 0.0
  %636 = vmatprep.subr.mxu0 0.0
  %637 = vmatpush1.msra.mxu0 0.0
  %638 = vmatprep.subr.mxu0 0.0
  %639 = vmatpush1.msra.mxu0 0.0
  %640 = vmatprep.subr.mxu0 0.0
  %641 = vmatpush1.msra.mxu0 0.0
  %642 = vmatprep.subr.mxu0 0.0
  %643 = vmatpush1.msra.mxu0 0.0
  %644 = vmatprep.subr.mxu0 0.0
  %645 = vmatpush1.msra.mxu0 0.0
  %646 = vmatprep.subr.mxu0 0.0
  %647 = vmatpush1.msra.mxu0 0.0
  %648 = vmatprep.mubr.f32.mxu0 0.0
  %649 = vmatmul.mubr.f32.gmra.mrb[0].mxu0 %v582
  %v650 = vpop.f32.mrb[0].mxu0
  %v651 = vadd.f32 0.0, %v650
  %v652 = vpop.f32.mrb[0].mxu0
  %653 = vdwg.mxu0
  %v654 = vadd.f32 %v173, %v651
  %v655 = vtanh.pop %v654
  %v656 = vxor.u32 %v654, 2147483648
  %v657 = vmul.f32 %v656, 1.442695
  %v658 = vpow.pop %v657
  %v659 = vadd.f32 %v658, 1.0
  %v660 = vrcp.pop %v659
  %v661 = vmul.f32 1.0, %v660
  %v662 = vsel %vm205, %v655, %v661
  %v663 = vmul.f32 %v662, %v400
  %665 = vrot.lane.b32.xlu0 %v662, 64
  %v666 = vpop.permute.xlu0 %665
  %v668 = vmul.f32 %v662, %v666
  %670 = vrot.lane.b32.xlu0 %v668, 32
  %v671 = vpop.permute.xlu0 %670
  %v673 = vadd.f32 %v663, %v671
  %v674 = vtanh.pop %v673
  %676 = vrot.lane.b32.xlu0 %v674, 64
  %v677 = vpop.permute.xlu0 %676
  %v679 = vmul.f32 %v662, %v677
  %681 = vrot.lane.b32.xlu0 %v578, 32
  %v682 = vpop.permute.xlu0 %681
  %v683 = vsel %vm206, %v682, 0
  %685 = vmatprep.subr.mxu0 0.0
  %686 = vmatpush1.msra.mxu0 %v47
  %687 = vmatprep.subr.mxu0 0.0
  %688 = vmatpush1.msra.mxu0 %v48
  %689 = vmatprep.subr.mxu0 0.0
  %690 = vmatpush1.msra.mxu0 %v49
  %691 = vmatprep.subr.mxu0 0.0
  %692 = vmatpush1.msra.mxu0 %v50
  %693 = vmatprep.subr.mxu0 0.0
  %694 = vmatpush1.msra.mxu0 0.0
  %695 = vmatprep.subr.mxu0 0.0
  %696 = vmatpush1.msra.mxu0 0.0
  %697 = vmatprep.subr.mxu0 0.0
  %698 = vmatpush1.msra.mxu0 0.0
  %699 = vmatprep.subr.mxu0 0.0
  %700 = vmatpush1.msra.mxu0 0.0
  %701 = vmatprep.subr.mxu0 0.0
  %702 = vmatpush1.msra.mxu0 0.0
  %703 = vmatprep.subr.mxu0 0.0
  %704 = vmatpush1.msra.mxu0 0.0
  %705 = vmatprep.subr.mxu0 0.0
  %706 = vmatpush1.msra.mxu0 0.0
  %707 = vmatprep.subr.mxu0 0.0
  %708 = vmatpush1.msra.mxu0 0.0
  %709 = vmatprep.subr.mxu0 0.0
  %710 = vmatpush1.msra.mxu0 0.0
  %711 = vmatprep.subr.mxu0 0.0
  %712 = vmatpush1.msra.mxu0 0.0
  %713 = vmatprep.subr.mxu0 0.0
  %714 = vmatpush1.msra.mxu0 0.0
  %715 = vmatprep.subr.mxu0 0.0
  %716 = vmatpush1.msra.mxu0 0.0
  %717 = vmatprep.subr.mxu0 0.0
  %718 = vmatpush1.msra.mxu0 0.0
  %719 = vmatprep.subr.mxu0 0.0
  %720 = vmatpush1.msra.mxu0 0.0
  %721 = vmatprep.subr.mxu0 0.0
  %722 = vmatpush1.msra.mxu0 0.0
  %723 = vmatprep.subr.mxu0 0.0
  %724 = vmatpush1.msra.mxu0 0.0
  %725 = vmatprep.subr.mxu0 0.0
  %726 = vmatpush1.msra.mxu0 0.0
  %727 = vmatprep.subr.mxu0 0.0
  %728 = vmatpush1.msra.mxu0 0.0
  %729 = vmatprep.subr.mxu0 0.0
  %730 = vmatpush1.msra.mxu0 0.0
  %731 = vmatprep.subr.mxu0 0.0
  %732 = vmatpush1.msra.mxu0 0.0
  %733 = vmatprep.subr.mxu0 0.0
  %734 = vmatpush1.msra.mxu0 0.0
  %735 = vmatprep.subr.mxu0 0.0
  %736 = vmatpush1.msra.mxu0 0.0
  %737 = vmatprep.subr.mxu0 0.0
  %738 = vmatpush1.msra.mxu0 0.0
  %739 = vmatprep.subr.mxu0 0.0
  %740 = vmatpush1.msra.mxu0 0.0
  %741 = vmatprep.subr.mxu0 0.0
  %742 = vmatpush1.msra.mxu0 0.0
  %743 = vmatprep.subr.mxu0 0.0
  %744 = vmatpush1.msra.mxu0 0.0
  %745 = vmatprep.subr.mxu0 0.0
  %746 = vmatpush1.msra.mxu0 0.0
  %747 = vmatprep.subr.mxu0 0.0
  %748 = vmatpush1.msra.mxu0 0.0
  %749 = vmatprep.mubr.f32.mxu0 0.0
  %750 = vmatmul.mubr.f32.gmra.mrb[0].mxu0 %v683
  %v751 = vpop.f32.mrb[0].mxu0
  %v752 = vadd.f32 0.0, %v751
  %v753 = vpop.f32.mrb[0].mxu0
  %754 = vdwg.mxu0
  %755 = vmatprep.subr.mxu0 0.0
  %756 = vmatpush1.msra.mxu0 %v39
  %757 = vmatprep.subr.mxu0 0.0
  %758 = vmatpush1.msra.mxu0 %v40
  %759 = vmatprep.subr.mxu0 0.0
  %760 = vmatpush1.msra.mxu0 %v41
  %761 = vmatprep.subr.mxu0 0.0
  %762 = vmatpush1.msra.mxu0 %v42
  %763 = vmatprep.subr.mxu0 0.0
  %764 = vmatpush1.msra.mxu0 0.0
  %765 = vmatprep.subr.mxu0 0.0
  %766 = vmatpush1.msra.mxu0 0.0
  %767 = vmatprep.subr.mxu0 0.0
  %768 = vmatpush1.msra.mxu0 0.0
  %769 = vmatprep.subr.mxu0 0.0
  %770 = vmatpush1.msra.mxu0 0.0
  %771 = vmatprep.subr.mxu0 0.0
  %772 = vmatpush1.msra.mxu0 0.0
  %773 = vmatprep.subr.mxu0 0.0
  %774 = vmatpush1.msra.mxu0 0.0
  %775 = vmatprep.subr.mxu0 0.0
  %776 = vmatpush1.msra.mxu0 0.0
  %777 = vmatprep.subr.mxu0 0.0
  %778 = vmatpush1.msra.mxu0 0.0
  %779 = vmatprep.subr.mxu0 0.0
  %780 = vmatpush1.msra.mxu0 0.0
  %781 = vmatprep.subr.mxu0 0.0
  %782 = vmatpush1.msra.mxu0 0.0
  %783 = vmatprep.subr.mxu0 0.0
  %784 = vmatpush1.msra.mxu0 0.0
  %785 = vmatprep.subr.mxu0 0.0
  %786 = vmatpush1.msra.mxu0 0.0
  %787 = vmatprep.subr.mxu0 0.0
  %788 = vmatpush1.msra.mxu0 0.0
  %789 = vmatprep.subr.mxu0 0.0
  %790 = vmatpush1.msra.mxu0 0.0
  %791 = vmatprep.subr.mxu0 0.0
  %792 = vmatpush1.msra.mxu0 0.0
  %793 = vmatprep.subr.mxu0 0.0
  %794 = vmatpush1.msra.mxu0 0.0
  %795 = vmatprep.subr.mxu0 0.0
  %796 = vmatpush1.msra.mxu0 0.0
  %797 = vmatprep.subr.mxu0 0.0
  %798 = vmatpush1.msra.mxu0 0.0
  %799 = vmatprep.subr.mxu0 0.0
  %800 = vmatpush1.msra.mxu0 0.0
  %801 = vmatprep.subr.mxu0 0.0
  %802 = vmatpush1.msra.mxu0 0.0
  %803 = vmatprep.subr.mxu0 0.0
  %804 = vmatpush1.msra.mxu0 0.0
  %805 = vmatprep.subr.mxu0 0.0
  %806 = vmatpush1.msra.mxu0 0.0
  %807 = vmatprep.subr.mxu0 0.0
  %808 = vmatpush1.msra.mxu0 0.0
  %809 = vmatprep.subr.mxu0 0.0
  %810 = vmatpush1.msra.mxu0 0.0
  %811 = vmatprep.subr.mxu0 0.0
  %812 = vmatpush1.msra.mxu0 0.0
  %813 = vmatprep.subr.mxu0 0.0
  %814 = vmatpush1.msra.mxu0 0.0
  %815 = vmatprep.subr.mxu0 0.0
  %816 = vmatpush1.msra.mxu0 0.0
  %817 = vmatprep.subr.mxu0 0.0
  %818 = vmatpush1.msra.mxu0 0.0
  %819 = vmatprep.mubr.f32.mxu0 0.0
  %820 = vmatmul.mubr.f32.gmra.mrb[0].mxu0 %v582
  %v821 = vpop.f32.mrb[0].mxu0
  %v822 = vadd.f32 %v752, %v821
  %v823 = vpop.f32.mrb[0].mxu0
  %824 = vdwg.mxu0
  %v825 = vadd.f32 %v822, %v551
  %v826 = vtanh.pop %v825
  %v827 = vxor.u32 %v825, 2147483648
  %v828 = vmul.f32 %v827, 1.442695
  %v829 = vpow.pop %v828
  %v830 = vadd.f32 %v829, 1.0
  %v831 = vrcp.pop %v830
  %v832 = vmul.f32 1.0, %v831
  %v833 = vsel %vm205, %v826, %v832
  %v834 = vmul.f32 %v833, %v572
  %836 = vrot.lane.b32.xlu0 %v833, 64
  %v837 = vpop.permute.xlu0 %836
  %v839 = vmul.f32 %v833, %v837
  %841 = vrot.lane.b32.xlu0 %v839, 32
  %v842 = vpop.permute.xlu0 %841
  %v844 = vadd.f32 %v834, %v842
  %v845 = vtanh.pop %v844
  %847 = vrot.lane.b32.xlu0 %v845, 64
  %v848 = vpop.permute.xlu0 %847
  %v850 = vmul.f32 %v833, %v848
  %852 = vrot.lane.b32.xlu0 %v679, 32
  %v853 = vpop.permute.xlu0 %852
  %v854 = vsel %vm206, %v853, 0
  %856 = vmatprep.subr.mxu0 0.0
  %857 = vmatpush1.msra.mxu0 %v43
  %858 = vmatprep.subr.mxu0 0.0
  %859 = vmatpush1.msra.mxu0 %v44
  %860 = vmatprep.subr.mxu0 0.0
  %861 = vmatpush1.msra.mxu0 %v45
  %862 = vmatprep.subr.mxu0 0.0
  %863 = vmatpush1.msra.mxu0 %v46
  %864 = vmatprep.subr.mxu0 0.0
  %865 = vmatpush1.msra.mxu0 0.0
  %866 = vmatprep.subr.mxu0 0.0
  %867 = vmatpush1.msra.mxu0 0.0
  %868 = vmatprep.subr.mxu0 0.0
  %869 = vmatpush1.msra.mxu0 0.0
  %870 = vmatprep.subr.mxu0 0.0
  %871 = vmatpush1.msra.mxu0 0.0
  %872 = vmatprep.subr.mxu0 0.0
  %873 = vmatpush1.msra.mxu0 0.0
  %874 = vmatprep.subr.mxu0 0.0
  %875 = vmatpush1.msra.mxu0 0.0
  %876 = vmatprep.subr.mxu0 0.0
  %877 = vmatpush1.msra.mxu0 0.0
  %878 = vmatprep.subr.mxu0 0.0
  %879 = vmatpush1.msra.mxu0 0.0
  %880 = vmatprep.subr.mxu0 0.0
  %881 = vmatpush1.msra.mxu0 0.0
  %882 = vmatprep.subr.mxu0 0.0
  %883 = vmatpush1.msra.mxu0 0.0
  %884 = vmatprep.subr.mxu0 0.0
  %885 = vmatpush1.msra.mxu0 0.0
  %886 = vmatprep.subr.mxu0 0.0
  %887 = vmatpush1.msra.mxu0 0.0
  %888 = vmatprep.subr.mxu0 0.0
  %889 = vmatpush1.msra.mxu0 0.0
  %890 = vmatprep.subr.mxu0 0.0
  %891 = vmatpush1.msra.mxu0 0.0
  %892 = vmatprep.subr.mxu0 0.0
  %893 = vmatpush1.msra.mxu0 0.0
  %894 = vmatprep.subr.mxu0 0.0
  %895 = vmatpush1.msra.mxu0 0.0
  %896 = vmatprep.subr.mxu0 0.0
  %897 = vmatpush1.msra.mxu0 0.0
  %898 = vmatprep.subr.mxu0 0.0
  %899 = vmatpush1.msra.mxu0 0.0
  %900 = vmatprep.subr.mxu0 0.0
  %901 = vmatpush1.msra.mxu0 0.0
  %902 = vmatprep.subr.mxu0 0.0
  %903 = vmatpush1.msra.mxu0 0.0
  %904 = vmatprep.subr.mxu0 0.0
  %905 = vmatpush1.msra.mxu0 0.0
  %906 = vmatprep.subr.mxu0 0.0
  %907 = vmatpush1.msra.mxu0 0.0
  %908 = vmatprep.subr.mxu0 0.0
  %909 = vmatpush1.msra.mxu0 0.0
  %910 = vmatprep.subr.mxu0 0.0
  %911 = vmatpush1.msra.mxu0 0.0
  %912 = vmatprep.subr.mxu0 0.0
  %913 = vmatpush1.msra.mxu0 0.0
  %914 = vmatprep.subr.mxu0 0.0
  %915 = vmatpush1.msra.mxu0 0.0
  %916 = vmatprep.subr.mxu0 0.0
  %917 = vmatpush1.msra.mxu0 0.0
  %918 = vmatprep.subr.mxu0 0.0
  %919 = vmatpush1.msra.mxu0 0.0
  %920 = vmatprep.mubr.f32.mxu0 0.0
  %921 = vmatmul.mubr.f32.gmra.mrb[0].mxu0 %v854
  %v922 = vpop.f32.mrb[0].mxu0
  %v923 = vadd.f32 0.0, %v922
  %v924 = vpop.f32.mrb[0].mxu0
  %925 = vdwg.mxu0
  %v926 = vadd.f32 %v178, %v923
  %v927 = vtanh.pop %v926
  %v928 = vxor.u32 %v926, 2147483648
  %v929 = vmul.f32 %v928, 1.442695
  %v930 = vpow.pop %v929
  %v931 = vadd.f32 %v930, 1.0
  %v932 = vrcp.pop %v931
  %v933 = vmul.f32 1.0, %v932
  %v934 = vsel %vm205, %v927, %v933
  %v935 = vmul.f32 %v934, %v673
  %937 = vrot.lane.b32.xlu0 %v934, 64
  %v938 = vpop.permute.xlu0 %937
  %v940 = vmul.f32 %v934, %v938
  %942 = vrot.lane.b32.xlu0 %v940, 32
  %v943 = vpop.permute.xlu0 %942
  %v945 = vadd.f32 %v935, %v943
  %v946 = vtanh.pop %v945
  %948 = vrot.lane.b32.xlu0 %v946, 64
  %v949 = vpop.permute.xlu0 %948
  %v951 = vmul.f32 %v934, %v949
  %953 = vrot.lane.b32.xlu0 %v850, 32
  %v954 = vpop.permute.xlu0 %953
  %v955 = vsel %vm206, %v954, 0
  %957 = vmatprep.subr.mxu0 0.0
  %958 = vmatpush1.msra.mxu0 %v47
  %959 = vmatprep.subr.mxu0 0.0
  %960 = vmatpush1.msra.mxu0 %v48
  %961 = vmatprep.subr.mxu0 0.0
  %962 = vmatpush1.msra.mxu0 %v49
  %963 = vmatprep.subr.mxu0 0.0
  %964 = vmatpush1.msra.mxu0 %v50
  %965 = vmatprep.subr.mxu0 0.0
  %966 = vmatpush1.msra.mxu0 0.0
  %967 = vmatprep.subr.mxu0 0.0
  %968 = vmatpush1.msra.mxu0 0.0
  %969 = vmatprep.subr.mxu0 0.0
  %970 = vmatpush1.msra.mxu0 0.0
  %971 = vmatprep.subr.mxu0 0.0
  %972 = vmatpush1.msra.mxu0 0.0
  %973 = vmatprep.subr.mxu0 0.0
  %974 = vmatpush1.msra.mxu0 0.0
  %975 = vmatprep.subr.mxu0 0.0
  %976 = vmatpush1.msra.mxu0 0.0
  %977 = vmatprep.subr.mxu0 0.0
  %978 = vmatpush1.msra.mxu0 0.0
  %979 = vmatprep.subr.mxu0 0.0
  %980 = vmatpush1.msra.mxu0 0.0
  %981 = vmatprep.subr.mxu0 0.0
  %982 = vmatpush1.msra.mxu0 0.0
  %983 = vmatprep.subr.mxu0 0.0
  %984 = vmatpush1.msra.mxu0 0.0
  %985 = vmatprep.subr.mxu0 0.0
  %986 = vmatpush1.msra.mxu0 0.0
  %987 = vmatprep.subr.mxu0 0.0
  %988 = vmatpush1.msra.mxu0 0.0
  %989 = vmatprep.subr.mxu0 0.0
  %990 = vmatpush1.msra.mxu0 0.0
  %991 = vmatprep.subr.mxu0 0.0
  %992 = vmatpush1.msra.mxu0 0.0
  %993 = vmatprep.subr.mxu0 0.0
  %994 = vmatpush1.msra.mxu0 0.0
  %995 = vmatprep.subr.mxu0 0.0
  %996 = vmatpush1.msra.mxu0 0.0
  %997 = vmatprep.subr.mxu0 0.0
  %998 = vmatpush1.msra.mxu0 0.0
  %999 = vmatprep.subr.mxu0 0.0
  %1000 = vmatpush1.msra.mxu0 0.0
  %1001 = vmatprep.subr.mxu0 0.0
  %1002 = vmatpush1.msra.mxu0 0.0
  %1003 = vmatprep.subr.mxu0 0.0
  %1004 = vmatpush1.msra.mxu0 0.0
  %1005 = vmatprep.subr.mxu0 0.0
  %1006 = vmatpush1.msra.mxu0 0.0
  %1007 = vmatprep.subr.mxu0 0.0
  %1008 = vmatpush1.msra.mxu0 0.0
  %1009 = vmatprep.subr.mxu0 0.0
  %1010 = vmatpush1.msra.mxu0 0.0
  %1011 = vmatprep.subr.mxu0 0.0
  %1012 = vmatpush1.msra.mxu0 0.0
  %1013 = vmatprep.subr.mxu0 0.0
  %1014 = vmatpush1.msra.mxu0 0.0
  %1015 = vmatprep.subr.mxu0 0.0
  %1016 = vmatpush1.msra.mxu0 0.0
  %1017 = vmatprep.subr.mxu0 0.0
  %1018 = vmatpush1.msra.mxu0 0.0
  %1019 = vmatprep.subr.mxu0 0.0
  %1020 = vmatpush1.msra.mxu0 0.0
  %1021 = vmatprep.mubr.f32.mxu0 0.0
  %1022 = vmatmul.mubr.f32.gmra.mrb[0].mxu0 %v955
  %v1023 = vpop.f32.mrb[0].mxu0
  %v1024 = vadd.f32 0.0, %v1023
  %v1025 = vpop.f32.mrb[0].mxu0
  %1026 = vdwg.mxu0
  %1027 = vmatprep.subr.mxu0 0.0
  %1028 = vmatpush1.msra.mxu0 %v39
  %1029 = vmatprep.subr.mxu0 0.0
  %1030 = vmatpush1.msra.mxu0 %v40
  %1031 = vmatprep.subr.mxu0 0.0
  %1032 = vmatpush1.msra.mxu0 %v41
  %1033 = vmatprep.subr.mxu0 0.0
  %1034 = vmatpush1.msra.mxu0 %v42
  %1035 = vmatprep.subr.mxu0 0.0
  %1036 = vmatpush1.msra.mxu0 0.0
  %1037 = vmatprep.subr.mxu0 0.0
  %1038 = vmatpush1.msra.mxu0 0.0
  %1039 = vmatprep.subr.mxu0 0.0
  %1040 = vmatpush1.msra.mxu0 0.0
  %1041 = vmatprep.subr.mxu0 0.0
  %1042 = vmatpush1.msra.mxu0 0.0
  %1043 = vmatprep.subr.mxu0 0.0
  %1044 = vmatpush1.msra.mxu0 0.0
  %1045 = vmatprep.subr.mxu0 0.0
  %1046 = vmatpush1.msra.mxu0 0.0
  %1047 = vmatprep.subr.mxu0 0.0
  %1048 = vmatpush1.msra.mxu0 0.0
  %1049 = vmatprep.subr.mxu0 0.0
  %1050 = vmatpush1.msra.mxu0 0.0
  %1051 = vmatprep.subr.mxu0 0.0
  %1052 = vmatpush1.msra.mxu0 0.0
  %1053 = vmatprep.subr.mxu0 0.0
  %1054 = vmatpush1.msra.mxu0 0.0
  %1055 = vmatprep.subr.mxu0 0.0
  %1056 = vmatpush1.msra.mxu0 0.0
  %1057 = vmatprep.subr.mxu0 0.0
  %1058 = vmatpush1.msra.mxu0 0.0
  %1059 = vmatprep.subr.mxu0 0.0
  %1060 = vmatpush1.msra.mxu0 0.0
  %1061 = vmatprep.subr.mxu0 0.0
  %1062 = vmatpush1.msra.mxu0 0.0
  %1063 = vmatprep.subr.mxu0 0.0
  %1064 = vmatpush1.msra.mxu0 0.0
  %1065 = vmatprep.subr.mxu0 0.0
  %1066 = vmatpush1.msra.mxu0 0.0
  %1067 = vmatprep.subr.mxu0 0.0
  %1068 = vmatpush1.msra.mxu0 0.0
  %1069 = vmatprep.subr.mxu0 0.0
  %1070 = vmatpush1.msra.mxu0 0.0
  %1071 = vmatprep.subr.mxu0 0.0
  %1072 = vmatpush1.msra.mxu0 0.0
  %1073 = vmatprep.subr.mxu0 0.0
  %1074 = vmatpush1.msra.mxu0 0.0
  %1075 = vmatprep.subr.mxu0 0.0
  %1076 = vmatpush1.msra.mxu0 0.0
  %1077 = vmatprep.subr.mxu0 0.0
  %1078 = vmatpush1.msra.mxu0 0.0
  %1079 = vmatprep.subr.mxu0 0.0
  %1080 = vmatpush1.msra.mxu0 0.0
  %1081 = vmatprep.subr.mxu0 0.0
  %1082 = vmatpush1.msra.mxu0 0.0
  %1083 = vmatprep.subr.mxu0 0.0
  %1084 = vmatpush1.msra.mxu0 0.0
  %1085 = vmatprep.subr.mxu0 0.0
  %1086 = vmatpush1.msra.mxu0 0.0
  %1087 = vmatprep.subr.mxu0 0.0
  %1088 = vmatpush1.msra.mxu0 0.0
  %1089 = vmatprep.subr.mxu0 0.0
  %1090 = vmatpush1.msra.mxu0 0.0
  %1091 = vmatprep.mubr.f32.mxu0 0.0
  %1092 = vmatmul.mubr.f32.gmra.mrb[0].mxu0 %v854
  %v1093 = vpop.f32.mrb[0].mxu0
  %v1094 = vadd.f32 %v1024, %v1093
  %v1095 = vpop.f32.mrb[0].mxu0
  %1096 = vdwg.mxu0
  %v1097 = vadd.f32 %v1094, %v551
  %v1098 = vtanh.pop %v1097
  %v1099 = vxor.u32 %v1097, 2147483648
  %v1100 = vmul.f32 %v1099, 1.442695
  %v1101 = vpow.pop %v1100
  %v1102 = vadd.f32 %v1101, 1.0
  %v1103 = vrcp.pop %v1102
  %v1104 = vmul.f32 1.0, %v1103
  %v1105 = vsel %vm205, %v1098, %v1104
  %v1106 = vmul.f32 %v1105, %v844
  %1108 = vrot.lane.b32.xlu0 %v1105, 64
  %v1109 = vpop.permute.xlu0 %1108
  %v1111 = vmul.f32 %v1105, %v1109
  %1113 = vrot.lane.b32.xlu0 %v1111, 32
  %v1114 = vpop.permute.xlu0 %1113
  %v1116 = vadd.f32 %v1106, %v1114
  %v1117 = vtanh.pop %v1116
  %1119 = vrot.lane.b32.xlu0 %v1117, 64
  %v1120 = vpop.permute.xlu0 %1119
  %v1122 = vmul.f32 %v1105, %v1120
  %1124 = vrot.lane.b32.xlu0 %v951, 32
  %v1125 = vpop.permute.xlu0 %1124
  %v1126 = vsel %vm206, %v1125, 0
  %1128 = vmatprep.subr.mxu0 0.0
  %1129 = vmatpush1.msra.mxu0 %v43
  %1130 = vmatprep.subr.mxu0 0.0
  %1131 = vmatpush1.msra.mxu0 %v44
  %1132 = vmatprep.subr.mxu0 0.0
  %1133 = vmatpush1.msra.mxu0 %v45
  %1134 = vmatprep.subr.mxu0 0.0
  %1135 = vmatpush1.msra.mxu0 %v46
  %1136 = vmatprep.subr.mxu0 0.0
  %1137 = vmatpush1.msra.mxu0 0.0
  %1138 = vmatprep.subr.mxu0 0.0
  %1139 = vmatpush1.msra.mxu0 0.0
  %1140 = vmatprep.subr.mxu0 0.0
  %1141 = vmatpush1.msra.mxu0 0.0
  %1142 = vmatprep.subr.mxu0 0.0
  %1143 = vmatpush1.msra.mxu0 0.0
  %1144 = vmatprep.subr.mxu0 0.0
  %1145 = vmatpush1.msra.mxu0 0.0
  %1146 = vmatprep.subr.mxu0 0.0
  %1147 = vmatpush1.msra.mxu0 0.0
  %1148 = vmatprep.subr.mxu0 0.0
  %1149 = vmatpush1.msra.mxu0 0.0
  %1150 = vmatprep.subr.mxu0 0.0
  %1151 = vmatpush1.msra.mxu0 0.0
  %1152 = vmatprep.subr.mxu0 0.0
  %1153 = vmatpush1.msra.mxu0 0.0
  %1154 = vmatprep.subr.mxu0 0.0
  %1155 = vmatpush1.msra.mxu0 0.0
  %1156 = vmatprep.subr.mxu0 0.0
  %1157 = vmatpush1.msra.mxu0 0.0
  %1158 = vmatprep.subr.mxu0 0.0
  %1159 = vmatpush1.msra.mxu0 0.0
  %1160 = vmatprep.subr.mxu0 0.0
  %1161 = vmatpush1.msra.mxu0 0.0
  %1162 = vmatprep.subr.mxu0 0.0
  %1163 = vmatpush1.msra.mxu0 0.0
  %1164 = vmatprep.subr.mxu0 0.0
  %1165 = vmatpush1.msra.mxu0 0.0
  %1166 = vmatprep.subr.mxu0 0.0
  %1167 = vmatpush1.msra.mxu0 0.0
  %1168 = vmatprep.subr.mxu0 0.0
  %1169 = vmatpush1.msra.mxu0 0.0
  %1170 = vmatprep.subr.mxu0 0.0
  %1171 = vmatpush1.msra.mxu0 0.0
  %1172 = vmatprep.subr.mxu0 0.0
  %1173 = vmatpush1.msra.mxu0 0.0
  %1174 = vmatprep.subr.mxu0 0.0
  %1175 = vmatpush1.msra.mxu0 0.0
  %1176 = vmatprep.subr.mxu0 0.0
  %1177 = vmatpush1.msra.mxu0 0.0
  %1178 = vmatprep.subr.mxu0 0.0
  %1179 = vmatpush1.msra.mxu0 0.0
  %1180 = vmatprep.subr.mxu0 0.0
  %1181 = vmatpush1.msra.mxu0 0.0
  %1182 = vmatprep.subr.mxu0 0.0
  %1183 = vmatpush1.msra.mxu0 0.0
  %1184 = vmatprep.subr.mxu0 0.0
  %1185 = vmatpush1.msra.mxu0 0.0
  %1186 = vmatprep.subr.mxu0 0.0
  %1187 = vmatpush1.msra.mxu0 0.0
  %1188 = vmatprep.subr.mxu0 0.0
  %1189 = vmatpush1.msra.mxu0 0.0
  %1190 = vmatprep.subr.mxu0 0.0
  %1191 = vmatpush1.msra.mxu0 0.0
  %1192 = vmatprep.mubr.f32.mxu0 0.0
  %1193 = vmatmul.mubr.f32.gmra.mrb[0].mxu0 %v1126
  %v1194 = vpop.f32.mrb[0].mxu0
  %v1195 = vadd.f32 0.0, %v1194
  %v1196 = vpop.f32.mrb[0].mxu0
  %1197 = vdwg.mxu0
  %v1198 = vadd.f32 %v183, %v1195
  %v1199 = vtanh.pop %v1198
  %v1200 = vxor.u32 %v1198, 2147483648
  %v1201 = vmul.f32 %v1200, 1.442695
  %v1202 = vpow.pop %v1201
  %v1203 = vadd.f32 %v1202, 1.0
  %v1204 = vrcp.pop %v1203
  %v1205 = vmul.f32 1.0, %v1204
  %v1206 = vsel %vm205, %v1199, %v1205
  %v1207 = vmul.f32 %v1206, %v945
  %1209 = vrot.lane.b32.xlu0 %v1206, 64
  %v1210 = vpop.permute.xlu0 %1209
  %v1212 = vmul.f32 %v1206, %v1210
  %1214 = vrot.lane.b32.xlu0 %v1212, 32
  %v1215 = vpop.permute.xlu0 %1214
  %v1217 = vadd.f32 %v1207, %v1215
  %v1218 = vtanh.pop %v1217
  %1220 = vrot.lane.b32.xlu0 %v1218, 64
  %v1221 = vpop.permute.xlu0 %1220
  %v1223 = vmul.f32 %v1206, %v1221
  %1225 = vrot.lane.b32.xlu0 %v1122, 32
  %v1226 = vpop.permute.xlu0 %1225
  %v1227 = vsel %vm206, %v1226, 0
  %1229 = vmatprep.subr.mxu0 0.0
  %1230 = vmatpush1.msra.mxu0 %v47
  %1231 = vmatprep.subr.mxu0 0.0
  %1232 = vmatpush1.msra.mxu0 %v48
  %1233 = vmatprep.subr.mxu0 0.0
  %1234 = vmatpush1.msra.mxu0 %v49
  %1235 = vmatprep.subr.mxu0 0.0
  %1236 = vmatpush1.msra.mxu0 %v50
  %1237 = vmatprep.subr.mxu0 0.0
  %1238 = vmatpush1.msra.mxu0 0.0
  %1239 = vmatprep.subr.mxu0 0.0
  %1240 = vmatpush1.msra.mxu0 0.0
  %1241 = vmatprep.subr.mxu0 0.0
  %1242 = vmatpush1.msra.mxu0 0.0
  %1243 = vmatprep.subr.mxu0 0.0
  %1244 = vmatpush1.msra.mxu0 0.0
  %1245 = vmatprep.subr.mxu0 0.0
  %1246 = vmatpush1.msra.mxu0 0.0
  %1247 = vmatprep.subr.mxu0 0.0
  %1248 = vmatpush1.msra.mxu0 0.0
  %1249 = vmatprep.subr.mxu0 0.0
  %1250 = vmatpush1.msra.mxu0 0.0
  %1251 = vmatprep.subr.mxu0 0.0
  %1252 = vmatpush1.msra.mxu0 0.0
  %1253 = vmatprep.subr.mxu0 0.0
  %1254 = vmatpush1.msra.mxu0 0.0
  %1255 = vmatprep.subr.mxu0 0.0
  %1256 = vmatpush1.msra.mxu0 0.0
  %1257 = vmatprep.subr.mxu0 0.0
  %1258 = vmatpush1.msra.mxu0 0.0
  %1259 = vmatprep.subr.mxu0 0.0
  %1260 = vmatpush1.msra.mxu0 0.0
  %1261 = vmatprep.subr.mxu0 0.0
  %1262 = vmatpush1.msra.mxu0 0.0
  %1263 = vmatprep.subr.mxu0 0.0
  %1264 = vmatpush1.msra.mxu0 0.0
  %1265 = vmatprep.subr.mxu0 0.0
  %1266 = vmatpush1.msra.mxu0 0.0
  %1267 = vmatprep.subr.mxu0 0.0
  %1268 = vmatpush1.msra.mxu0 0.0
  %1269 = vmatprep.subr.mxu0 0.0
  %1270 = vmatpush1.msra.mxu0 0.0
  %1271 = vmatprep.subr.mxu0 0.0
  %1272 = vmatpush1.msra.mxu0 0.0
  %1273 = vmatprep.subr.mxu0 0.0
  %1274 = vmatpush1.msra.mxu0 0.0
  %1275 = vmatprep.subr.mxu0 0.0
  %1276 = vmatpush1.msra.mxu0 0.0
  %1277 = vmatprep.subr.mxu0 0.0
  %1278 = vmatpush1.msra.mxu0 0.0
  %1279 = vmatprep.subr.mxu0 0.0
  %1280 = vmatpush1.msra.mxu0 0.0
  %1281 = vmatprep.subr.mxu0 0.0
  %1282 = vmatpush1.msra.mxu0 0.0
  %1283 = vmatprep.subr.mxu0 0.0
  %1284 = vmatpush1.msra.mxu0 0.0
  %1285 = vmatprep.subr.mxu0 0.0
  %1286 = vmatpush1.msra.mxu0 0.0
  %1287 = vmatprep.subr.mxu0 0.0
  %1288 = vmatpush1.msra.mxu0 0.0
  %1289 = vmatprep.subr.mxu0 0.0
  %1290 = vmatpush1.msra.mxu0 0.0
  %1291 = vmatprep.subr.mxu0 0.0
  %1292 = vmatpush1.msra.mxu0 0.0
  %1293 = vmatprep.mubr.f32.mxu0 0.0
  %1294 = vmatmul.mubr.f32.gmra.mrb[0].mxu0 %v1227
  %v1295 = vpop.f32.mrb[0].mxu0
  %v1296 = vadd.f32 0.0, %v1295
  %v1297 = vpop.f32.mrb[0].mxu0
  %1298 = vdwg.mxu0
  %1299 = vmatprep.subr.mxu0 0.0
  %1300 = vmatpush1.msra.mxu0 %v39
  %1301 = vmatprep.subr.mxu0 0.0
  %1302 = vmatpush1.msra.mxu0 %v40
  %1303 = vmatprep.subr.mxu0 0.0
  %1304 = vmatpush1.msra.mxu0 %v41
  %1305 = vmatprep.subr.mxu0 0.0
  %1306 = vmatpush1.msra.mxu0 %v42
  %1307 = vmatprep.subr.mxu0 0.0
  %1308 = vmatpush1.msra.mxu0 0.0
  %1309 = vmatprep.subr.mxu0 0.0
  %1310 = vmatpush1.msra.mxu0 0.0
  %1311 = vmatprep.subr.mxu0 0.0
  %1312 = vmatpush1.msra.mxu0 0.0
  %1313 = vmatprep.subr.mxu0 0.0
  %1314 = vmatpush1.msra.mxu0 0.0
  %1315 = vmatprep.subr.mxu0 0.0
  %1316 = vmatpush1.msra.mxu0 0.0
  %1317 = vmatprep.subr.mxu0 0.0
  %1318 = vmatpush1.msra.mxu0 0.0
  %1319 = vmatprep.subr.mxu0 0.0
  %1320 = vmatpush1.msra.mxu0 0.0
  %1321 = vmatprep.subr.mxu0 0.0
  %1322 = vmatpush1.msra.mxu0 0.0
  %1323 = vmatprep.subr.mxu0 0.0
  %1324 = vmatpush1.msra.mxu0 0.0
  %1325 = vmatprep.subr.mxu0 0.0
  %1326 = vmatpush1.msra.mxu0 0.0
  %1327 = vmatprep.subr.mxu0 0.0
  %1328 = vmatpush1.msra.mxu0 0.0
  %1329 = vmatprep.subr.mxu0 0.0
  %1330 = vmatpush1.msra.mxu0 0.0
  %1331 = vmatprep.subr.mxu0 0.0
  %1332 = vmatpush1.msra.mxu0 0.0
  %1333 = vmatprep.subr.mxu0 0.0
  %1334 = vmatpush1.msra.mxu0 0.0
  %1335 = vmatprep.subr.mxu0 0.0
  %1336 = vmatpush1.msra.mxu0 0.0
  %1337 = vmatprep.subr.mxu0 0.0
  %1338 = vmatpush1.msra.mxu0 0.0
  %1339 = vmatprep.subr.mxu0 0.0
  %1340 = vmatpush1.msra.mxu0 0.0
  %1341 = vmatprep.subr.mxu0 0.0
  %1342 = vmatpush1.msra.mxu0 0.0
  %1343 = vmatprep.subr.mxu0 0.0
  %1344 = vmatpush1.msra.mxu0 0.0
  %1345 = vmatprep.subr.mxu0 0.0
  %1346 = vmatpush1.msra.mxu0 0.0
  %1347 = vmatprep.subr.mxu0 0.0
  %1348 = vmatpush1.msra.mxu0 0.0
  %1349 = vmatprep.subr.mxu0 0.0
  %1350 = vmatpush1.msra.mxu0 0.0
  %1351 = vmatprep.subr.mxu0 0.0
  %1352 = vmatpush1.msra.mxu0 0.0
  %1353 = vmatprep.subr.mxu0 0.0
  %1354 = vmatpush1.msra.mxu0 0.0
  %1355 = vmatprep.subr.mxu0 0.0
  %1356 = vmatpush1.msra.mxu0 0.0
  %1357 = vmatprep.subr.mxu0 0.0
  %1358 = vmatpush1.msra.mxu0 0.0
  %1359 = vmatprep.subr.mxu0 0.0
  %1360 = vmatpush1.msra.mxu0 0.0
  %1361 = vmatprep.subr.mxu0 0.0
  %1362 = vmatpush1.msra.mxu0 0.0
  %1363 = vmatprep.mubr.f32.mxu0 0.0
  %1364 = vmatmul.mubr.f32.gmra.mrb[0].mxu0 %v1126
  %v1365 = vpop.f32.mrb[0].mxu0
  %v1366 = vadd.f32 %v1296, %v1365
  %v1367 = vpop.f32.mrb[0].mxu0
  %1368 = vdwg.mxu0
  %v1369 = vadd.f32 %v1366, %v551
  %v1370 = vtanh.pop %v1369
  %v1371 = vxor.u32 %v1369, 2147483648
  %v1372 = vmul.f32 %v1371, 1.442695
  %v1373 = vpow.pop %v1372
  %v1374 = vadd.f32 %v1373, 1.0
  %v1375 = vrcp.pop %v1374
  %v1376 = vmul.f32 1.0, %v1375
  %v1377 = vsel %vm205, %v1370, %v1376
  %v1378 = vmul.f32 %v1377, %v1116
  %1380 = vrot.lane.b32.xlu0 %v1377, 64
  %v1381 = vpop.permute.xlu0 %1380
  %v1383 = vmul.f32 %v1377, %v1381
  %1385 = vrot.lane.b32.xlu0 %v1383, 32
  %v1386 = vpop.permute.xlu0 %1385
  %v1388 = vadd.f32 %v1378, %v1386
  %v1389 = vtanh.pop %v1388
  %1391 = vrot.lane.b32.xlu0 %v1389, 64
  %v1392 = vpop.permute.xlu0 %1391
  %v1394 = vmul.f32 %v1377, %v1392
  %1396 = vrot.lane.b32.xlu0 %v1223, 32
  %v1397 = vpop.permute.xlu0 %1396
  %v1398 = vsel %vm206, %v1397, 0
  %1400 = vmatprep.subr.mxu0 0.0
  %1401 = vmatpush1.msra.mxu0 %v43
  %1402 = vmatprep.subr.mxu0 0.0
  %1403 = vmatpush1.msra.mxu0 %v44
  %1404 = vmatprep.subr.mxu0 0.0
  %1405 = vmatpush1.msra.mxu0 %v45
  %1406 = vmatprep.subr.mxu0 0.0
  %1407 = vmatpush1.msra.mxu0 %v46
  %1408 = vmatprep.subr.mxu0 0.0
  %1409 = vmatpush1.msra.mxu0 0.0
  %1410 = vmatprep.subr.mxu0 0.0
  %1411 = vmatpush1.msra.mxu0 0.0
  %1412 = vmatprep.subr.mxu0 0.0
  %1413 = vmatpush1.msra.mxu0 0.0
  %1414 = vmatprep.subr.mxu0 0.0
  %1415 = vmatpush1.msra.mxu0 0.0
  %1416 = vmatprep.subr.mxu0 0.0
  %1417 = vmatpush1.msra.mxu0 0.0
  %1418 = vmatprep.subr.mxu0 0.0
  %1419 = vmatpush1.msra.mxu0 0.0
  %1420 = vmatprep.subr.mxu0 0.0
  %1421 = vmatpush1.msra.mxu0 0.0
  %1422 = vmatprep.subr.mxu0 0.0
  %1423 = vmatpush1.msra.mxu0 0.0
  %1424 = vmatprep.subr.mxu0 0.0
  %1425 = vmatpush1.msra.mxu0 0.0
  %1426 = vmatprep.subr.mxu0 0.0
  %1427 = vmatpush1.msra.mxu0 0.0
  %1428 = vmatprep.subr.mxu0 0.0
  %1429 = vmatpush1.msra.mxu0 0.0
  %1430 = vmatprep.subr.mxu0 0.0
  %1431 = vmatpush1.msra.mxu0 0.0
  %1432 = vmatprep.subr.mxu0 0.0
  %1433 = vmatpush1.msra.mxu0 0.0
  %1434 = vmatprep.subr.mxu0 0.0
  %1435 = vmatpush1.msra.mxu0 0.0
  %1436 = vmatprep.subr.mxu0 0.0
  %1437 = vmatpush1.msra.mxu0 0.0
  %1438 = vmatprep.subr.mxu0 0.0
  %1439 = vmatpush1.msra.mxu0 0.0
  %1440 = vmatprep.subr.mxu0 0.0
  %1441 = vmatpush1.msra.mxu0 0.0
  %1442 = vmatprep.subr.mxu0 0.0
  %1443 = vmatpush1.msra.mxu0 0.0
  %1444 = vmatprep.subr.mxu0 0.0
  %1445 = vmatpush1.msra.mxu0 0.0
  %1446 = vmatprep.subr.mxu0 0.0
  %1447 = vmatpush1.msra.mxu0 0.0
  %1448 = vmatprep.subr.mxu0 0.0
  %1449 = vmatpush1.msra.mxu0 0.0
  %1450 = vmatprep.subr.mxu0 0.0
  %1451 = vmatpush1.msra.mxu0 0.0
  %1452 = vmatprep.subr.mxu0 0.0
  %1453 = vmatpush1.msra.mxu0 0.0
  %1454 = vmatprep.subr.mxu0 0.0
  %1455 = vmatpush1.msra.mxu0 0.0
  %1456 = vmatprep.subr.mxu0 0.0
  %1457 = vmatpush1.msra.mxu0 0.0
  %1458 = vmatprep.subr.mxu0 0.0
  %1459 = vmatpush1.msra.mxu0 0.0
  %1460 = vmatprep.subr.mxu0 0.0
  %1461 = vmatpush1.msra.mxu0 0.0
  %1462 = vmatprep.subr.mxu0 0.0
  %1463 = vmatpush1.msra.mxu0 0.0
  %1464 = vmatprep.mubr.f32.mxu0 0.0
  %1465 = vmatmul.mubr.f32.gmra.mrb[0].mxu0 %v1398
  %v1466 = vpop.f32.mrb[0].mxu0
  %v1467 = vadd.f32 0.0, %v1466
  %v1468 = vpop.f32.mrb[0].mxu0
  %1469 = vdwg.mxu0
  %v1470 = vadd.f32 %v188, %v1467
  %v1471 = vtanh.pop %v1470
  %v1472 = vxor.u32 %v1470, 2147483648
  %v1473 = vmul.f32 %v1472, 1.442695
  %v1474 = vpow.pop %v1473
  %v1475 = vadd.f32 %v1474, 1.0
  %v1476 = vrcp.pop %v1475
  %v1477 = vmul.f32 1.0, %v1476
  %v1478 = vsel %vm205, %v1471, %v1477
  %v1479 = vmul.f32 %v1478, %v1217
  %1481 = vrot.lane.b32.xlu0 %v1478, 64
  %v1482 = vpop.permute.xlu0 %1481
  %v1484 = vmul.f32 %v1478, %v1482
  %1486 = vrot.lane.b32.xlu0 %v1484, 32
  %v1487 = vpop.permute.xlu0 %1486
  %v1489 = vadd.f32 %v1479, %v1487
  %v1490 = vtanh.pop %v1489
  %1492 = vrot.lane.b32.xlu0 %v1490, 64
  %v1493 = vpop.permute.xlu0 %1492
  %v1495 = vmul.f32 %v1478, %v1493
  %1497 = vrot.lane.b32.xlu0 %v1394, 32
  %v1498 = vpop.permute.xlu0 %1497
  %v1499 = vsel %vm206, %v1498, 0
  %1501 = vmatprep.subr.mxu0 0.0
  %1502 = vmatpush1.msra.mxu0 %v47
  %1503 = vmatprep.subr.mxu0 0.0
  %1504 = vmatpush1.msra.mxu0 %v48
  %1505 = vmatprep.subr.mxu0 0.0
  %1506 = vmatpush1.msra.mxu0 %v49
  %1507 = vmatprep.subr.mxu0 0.0
  %1508 = vmatpush1.msra.mxu0 %v50
  %1509 = vmatprep.subr.mxu0 0.0
  %1510 = vmatpush1.msra.mxu0 0.0
  %1511 = vmatprep.subr.mxu0 0.0
  %1512 = vmatpush1.msra.mxu0 0.0
  %1513 = vmatprep.subr.mxu0 0.0
  %1514 = vmatpush1.msra.mxu0 0.0
  %1515 = vmatprep.subr.mxu0 0.0
  %1516 = vmatpush1.msra.mxu0 0.0
  %1517 = vmatprep.subr.mxu0 0.0
  %1518 = vmatpush1.msra.mxu0 0.0
  %1519 = vmatprep.subr.mxu0 0.0
  %1520 = vmatpush1.msra.mxu0 0.0
  %1521 = vmatprep.subr.mxu0 0.0
  %1522 = vmatpush1.msra.mxu0 0.0
  %1523 = vmatprep.subr.mxu0 0.0
  %1524 = vmatpush1.msra.mxu0 0.0
  %1525 = vmatprep.subr.mxu0 0.0
  %1526 = vmatpush1.msra.mxu0 0.0
  %1527 = vmatprep.subr.mxu0 0.0
  %1528 = vmatpush1.msra.mxu0 0.0
  %1529 = vmatprep.subr.mxu0 0.0
  %1530 = vmatpush1.msra.mxu0 0.0
  %1531 = vmatprep.subr.mxu0 0.0
  %1532 = vmatpush1.msra.mxu0 0.0
  %1533 = vmatprep.subr.mxu0 0.0
  %1534 = vmatpush1.msra.mxu0 0.0
  %1535 = vmatprep.subr.mxu0 0.0
  %1536 = vmatpush1.msra.mxu0 0.0
  %1537 = vmatprep.subr.mxu0 0.0
  %1538 = vmatpush1.msra.mxu0 0.0
  %1539 = vmatprep.subr.mxu0 0.0
  %1540 = vmatpush1.msra.mxu0 0.0
  %1541 = vmatprep.subr.mxu0 0.0
  %1542 = vmatpush1.msra.mxu0 0.0
  %1543 = vmatprep.subr.mxu0 0.0
  %1544 = vmatpush1.msra.mxu0 0.0
  %1545 = vmatprep.subr.mxu0 0.0
  %1546 = vmatpush1.msra.mxu0 0.0
  %1547 = vmatprep.subr.mxu0 0.0
  %1548 = vmatpush1.msra.mxu0 0.0
  %1549 = vmatprep.subr.mxu0 0.0
  %1550 = vmatpush1.msra.mxu0 0.0
  %1551 = vmatprep.subr.mxu0 0.0
  %1552 = vmatpush1.msra.mxu0 0.0
  %1553 = vmatprep.subr.mxu0 0.0
  %1554 = vmatpush1.msra.mxu0 0.0
  %1555 = vmatprep.subr.mxu0 0.0
  %1556 = vmatpush1.msra.mxu0 0.0
  %1557 = vmatprep.subr.mxu0 0.0
  %1558 = vmatpush1.msra.mxu0 0.0
  %1559 = vmatprep.subr.mxu0 0.0
  %1560 = vmatpush1.msra.mxu0 0.0
  %1561 = vmatprep.subr.mxu0 0.0
  %1562 = vmatpush1.msra.mxu0 0.0
  %1563 = vmatprep.subr.mxu0 0.0
  %1564 = vmatpush1.msra.mxu0 0.0
  %1565 = vmatprep.mubr.f32.mxu0 0.0
  %1566 = vmatmul.mubr.f32.gmra.mrb[0].mxu0 %v1499
  %v1567 = vpop.f32.mrb[0].mxu0
  %v1568 = vadd.f32 0.0, %v1567
  %v1569 = vpop.f32.mrb[0].mxu0
  %1570 = vdwg.mxu0
  %1571 = vmatprep.subr.mxu0 0.0
  %1572 = vmatpush1.msra.mxu0 %v39
  %1573 = vmatprep.subr.mxu0 0.0
  %1574 = vmatpush1.msra.mxu0 %v40
  %1575 = vmatprep.subr.mxu0 0.0
  %1576 = vmatpush1.msra.mxu0 %v41
  %1577 = vmatprep.subr.mxu0 0.0
  %1578 = vmatpush1.msra.mxu0 %v42
  %1579 = vmatprep.subr.mxu0 0.0
  %1580 = vmatpush1.msra.mxu0 0.0
  %1581 = vmatprep.subr.mxu0 0.0
  %1582 = vmatpush1.msra.mxu0 0.0
  %1583 = vmatprep.subr.mxu0 0.0
  %1584 = vmatpush1.msra.mxu0 0.0
  %1585 = vmatprep.subr.mxu0 0.0
  %1586 = vmatpush1.msra.mxu0 0.0
  %1587 = vmatprep.subr.mxu0 0.0
  %1588 = vmatpush1.msra.mxu0 0.0
  %1589 = vmatprep.subr.mxu0 0.0
  %1590 = vmatpush1.msra.mxu0 0.0
  %1591 = vmatprep.subr.mxu0 0.0
  %1592 = vmatpush1.msra.mxu0 0.0
  %1593 = vmatprep.subr.mxu0 0.0
  %1594 = vmatpush1.msra.mxu0 0.0
  %1595 = vmatprep.subr.mxu0 0.0
  %1596 = vmatpush1.msra.mxu0 0.0
  %1597 = vmatprep.subr.mxu0 0.0
  %1598 = vmatpush1.msra.mxu0 0.0
  %1599 = vmatprep.subr.mxu0 0.0
  %1600 = vmatpush1.msra.mxu0 0.0
  %1601 = vmatprep.subr.mxu0 0.0
  %1602 = vmatpush1.msra.mxu0 0.0
  %1603 = vmatprep.subr.mxu0 0.0
  %1604 = vmatpush1.msra.mxu0 0.0
  %1605 = vmatprep.subr.mxu0 0.0
  %1606 = vmatpush1.msra.mxu0 0.0
  %1607 = vmatprep.subr.mxu0 0.0
  %1608 = vmatpush1.msra.mxu0 0.0
  %1609 = vmatprep.subr.mxu0 0.0
  %1610 = vmatpush1.msra.mxu0 0.0
  %1611 = vmatprep.subr.mxu0 0.0
  %1612 = vmatpush1.msra.mxu0 0.0
  %1613 = vmatprep.subr.mxu0 0.0
  %1614 = vmatpush1.msra.mxu0 0.0
  %1615 = vmatprep.subr.mxu0 0.0
  %1616 = vmatpush1.msra.mxu0 0.0
  %1617 = vmatprep.subr.mxu0 0.0
  %1618 = vmatpush1.msra.mxu0 0.0
  %1619 = vmatprep.subr.mxu0 0.0
  %1620 = vmatpush1.msra.mxu0 0.0
  %1621 = vmatprep.subr.mxu0 0.0
  %1622 = vmatpush1.msra.mxu0 0.0
  %1623 = vmatprep.subr.mxu0 0.0
  %1624 = vmatpush1.msra.mxu0 0.0
  %1625 = vmatprep.subr.mxu0 0.0
  %1626 = vmatpush1.msra.mxu0 0.0
  %1627 = vmatprep.subr.mxu0 0.0
  %1628 = vmatpush1.msra.mxu0 0.0
  %1629 = vmatprep.subr.mxu0 0.0
  %1630 = vmatpush1.msra.mxu0 0.0
  %1631 = vmatprep.subr.mxu0 0.0
  %1632 = vmatpush1.msra.mxu0 0.0
  %1633 = vmatprep.subr.mxu0 0.0
  %1634 = vmatpush1.msra.mxu0 0.0
  %1635 = vmatprep.mubr.f32.mxu0 0.0
  %1636 = vmatmul.mubr.f32.gmra.mrb[0].mxu0 %v1398
  %v1637 = vpop.f32.mrb[0].mxu0
  %v1638 = vadd.f32 %v1568, %v1637
  %v1639 = vpop.f32.mrb[0].mxu0
  %1640 = vdwg.mxu0
  %v1641 = vadd.f32 %v1638, %v551
  %v1642 = vtanh.pop %v1641
  %v1643 = vxor.u32 %v1641, 2147483648
  %v1644 = vmul.f32 %v1643, 1.442695
  %v1645 = vpow.pop %v1644
  %v1646 = vadd.f32 %v1645, 1.0
  %v1647 = vrcp.pop %v1646
  %v1648 = vmul.f32 1.0, %v1647
  %v1649 = vsel %vm205, %v1642, %v1648
  %v1650 = vmul.f32 %v1649, %v1388
  %1652 = vrot.lane.b32.xlu0 %v1649, 64
  %v1653 = vpop.permute.xlu0 %1652
  %v1655 = vmul.f32 %v1649, %v1653
  %1657 = vrot.lane.b32.xlu0 %v1655, 32
  %v1658 = vpop.permute.xlu0 %1657
  %v1660 = vadd.f32 %v1650, %v1658
  %v1661 = vtanh.pop %v1660
  %1663 = vrot.lane.b32.xlu0 %v1661, 64
  %v1664 = vpop.permute.xlu0 %1663
  %v1666 = vmul.f32 %v1649, %v1664
  %1668 = vrot.lane.b32.xlu0 %v1495, 32
  %v1669 = vpop.permute.xlu0 %1668
  %v1670 = vsel %vm206, %v1669, 0
  %1672 = vmatprep.subr.mxu0 0.0
  %1673 = vmatpush1.msra.mxu0 %v43
  %1674 = vmatprep.subr.mxu0 0.0
  %1675 = vmatpush1.msra.mxu0 %v44
  %1676 = vmatprep.subr.mxu0 0.0
  %1677 = vmatpush1.msra.mxu0 %v45
  %1678 = vmatprep.subr.mxu0 0.0
  %1679 = vmatpush1.msra.mxu0 %v46
  %1680 = vmatprep.subr.mxu0 0.0
  %1681 = vmatpush1.msra.mxu0 0.0
  %1682 = vmatprep.subr.mxu0 0.0
  %1683 = vmatpush1.msra.mxu0 0.0
  %1684 = vmatprep.subr.mxu0 0.0
  %1685 = vmatpush1.msra.mxu0 0.0
  %1686 = vmatprep.subr.mxu0 0.0
  %1687 = vmatpush1.msra.mxu0 0.0
  %1688 = vmatprep.subr.mxu0 0.0
  %1689 = vmatpush1.msra.mxu0 0.0
  %1690 = vmatprep.subr.mxu0 0.0
  %1691 = vmatpush1.msra.mxu0 0.0
  %1692 = vmatprep.subr.mxu0 0.0
  %1693 = vmatpush1.msra.mxu0 0.0
  %1694 = vmatprep.subr.mxu0 0.0
  %1695 = vmatpush1.msra.mxu0 0.0
  %1696 = vmatprep.subr.mxu0 0.0
  %1697 = vmatpush1.msra.mxu0 0.0
  %1698 = vmatprep.subr.mxu0 0.0
  %1699 = vmatpush1.msra.mxu0 0.0
  %1700 = vmatprep.subr.mxu0 0.0
  %1701 = vmatpush1.msra.mxu0 0.0
  %1702 = vmatprep.subr.mxu0 0.0
  %1703 = vmatpush1.msra.mxu0 0.0
  %1704 = vmatprep.subr.mxu0 0.0
  %1705 = vmatpush1.msra.mxu0 0.0
  %1706 = vmatprep.subr.mxu0 0.0
  %1707 = vmatpush1.msra.mxu0 0.0
  %1708 = vmatprep.subr.mxu0 0.0
  %1709 = vmatpush1.msra.mxu0 0.0
  %1710 = vmatprep.subr.mxu0 0.0
  %1711 = vmatpush1.msra.mxu0 0.0
  %1712 = vmatprep.subr.mxu0 0.0
  %1713 = vmatpush1.msra.mxu0 0.0
  %1714 = vmatprep.subr.mxu0 0.0
  %1715 = vmatpush1.msra.mxu0 0.0
  %1716 = vmatprep.subr.mxu0 0.0
  %1717 = vmatpush1.msra.mxu0 0.0
  %1718 = vmatprep.subr.mxu0 0.0
  %1719 = vmatpush1.msra.mxu0 0.0
  %1720 = vmatprep.subr.mxu0 0.0
  %1721 = vmatpush1.msra.mxu0 0.0
  %1722 = vmatprep.subr.mxu0 0.0
  %1723 = vmatpush1.msra.mxu0 0.0
  %1724 = vmatprep.subr.mxu0 0.0
  %1725 = vmatpush1.msra.mxu0 0.0
  %1726 = vmatprep.subr.mxu0 0.0
  %1727 = vmatpush1.msra.mxu0 0.0
  %1728 = vmatprep.subr.mxu0 0.0
  %1729 = vmatpush1.msra.mxu0 0.0
  %1730 = vmatprep.subr.mxu0 0.0
  %1731 = vmatpush1.msra.mxu0 0.0
  %1732 = vmatprep.subr.mxu0 0.0
  %1733 = vmatpush1.msra.mxu0 0.0
  %1734 = vmatprep.subr.mxu0 0.0
  %1735 = vmatpush1.msra.mxu0 0.0
  %1736 = vmatprep.mubr.f32.mxu0 0.0
  %1737 = vmatmul.mubr.f32.gmra.mrb[0].mxu0 %v1670
  %v1738 = vpop.f32.mrb[0].mxu0
  %v1739 = vadd.f32 0.0, %v1738
  %v1740 = vpop.f32.mrb[0].mxu0
  %1741 = vdwg.mxu0
  %v1742 = vadd.f32 %v193, %v1739
  %v1743 = vtanh.pop %v1742
  %v1744 = vxor.u32 %v1742, 2147483648
  %v1745 = vmul.f32 %v1744, 1.442695
  %v1746 = vpow.pop %v1745
  %v1747 = vadd.f32 %v1746, 1.0
  %v1748 = vrcp.pop %v1747
  %v1749 = vmul.f32 1.0, %v1748
  %v1750 = vsel %vm205, %v1743, %v1749
  %v1751 = vmul.f32 %v1750, %v1489
  %1753 = vrot.lane.b32.xlu0 %v1750, 64
  %v1754 = vpop.permute.xlu0 %1753
  %v1756 = vmul.f32 %v1750, %v1754
  %1758 = vrot.lane.b32.xlu0 %v1756, 32
  %v1759 = vpop.permute.xlu0 %1758
  %v1761 = vadd.f32 %v1751, %v1759
  %v1762 = vtanh.pop %v1761
  %1764 = vrot.lane.b32.xlu0 %v1762, 64
  %v1765 = vpop.permute.xlu0 %1764
  %v1767 = vmul.f32 %v1750, %v1765
  %1769 = vrot.lane.b32.xlu0 %v1666, 32
  %v1770 = vpop.permute.xlu0 %1769
  %v1771 = vsel %vm206, %v1770, 0
  %1773 = vmatprep.subr.mxu0 0.0
  %1774 = vmatpush1.msra.mxu0 %v47
  %1775 = vmatprep.subr.mxu0 0.0
  %1776 = vmatpush1.msra.mxu0 %v48
  %1777 = vmatprep.subr.mxu0 0.0
  %1778 = vmatpush1.msra.mxu0 %v49
  %1779 = vmatprep.subr.mxu0 0.0
  %1780 = vmatpush1.msra.mxu0 %v50
  %1781 = vmatprep.subr.mxu0 0.0
  %1782 = vmatpush1.msra.mxu0 0.0
  %1783 = vmatprep.subr.mxu0 0.0
  %1784 = vmatpush1.msra.mxu0 0.0
  %1785 = vmatprep.subr.mxu0 0.0
  %1786 = vmatpush1.msra.mxu0 0.0
  %1787 = vmatprep.subr.mxu0 0.0
  %1788 = vmatpush1.msra.mxu0 0.0
  %1789 = vmatprep.subr.mxu0 0.0
  %1790 = vmatpush1.msra.mxu0 0.0
  %1791 = vmatprep.subr.mxu0 0.0
  %1792 = vmatpush1.msra.mxu0 0.0
  %1793 = vmatprep.subr.mxu0 0.0
  %1794 = vmatpush1.msra.mxu0 0.0
  %1795 = vmatprep.subr.mxu0 0.0
  %1796 = vmatpush1.msra.mxu0 0.0
  %1797 = vmatprep.subr.mxu0 0.0
  %1798 = vmatpush1.msra.mxu0 0.0
  %1799 = vmatprep.subr.mxu0 0.0
  %1800 = vmatpush1.msra.mxu0 0.0
  %1801 = vmatprep.subr.mxu0 0.0
  %1802 = vmatpush1.msra.mxu0 0.0
  %1803 = vmatprep.subr.mxu0 0.0
  %1804 = vmatpush1.msra.mxu0 0.0
  %1805 = vmatprep.subr.mxu0 0.0
  %1806 = vmatpush1.msra.mxu0 0.0
  %1807 = vmatprep.subr.mxu0 0.0
  %1808 = vmatpush1.msra.mxu0 0.0
  %1809 = vmatprep.subr.mxu0 0.0
  %1810 = vmatpush1.msra.mxu0 0.0
  %1811 = vmatprep.subr.mxu0 0.0
  %1812 = vmatpush1.msra.mxu0 0.0
  %1813 = vmatprep.subr.mxu0 0.0
  %1814 = vmatpush1.msra.mxu0 0.0
  %1815 = vmatprep.subr.mxu0 0.0
  %1816 = vmatpush1.msra.mxu0 0.0
  %1817 = vmatprep.subr.mxu0 0.0
  %1818 = vmatpush1.msra.mxu0 0.0
  %1819 = vmatprep.subr.mxu0 0.0
  %1820 = vmatpush1.msra.mxu0 0.0
  %1821 = vmatprep.subr.mxu0 0.0
  %1822 = vmatpush1.msra.mxu0 0.0
  %1823 = vmatprep.subr.mxu0 0.0
  %1824 = vmatpush1.msra.mxu0 0.0
  %1825 = vmatprep.subr.mxu0 0.0
  %1826 = vmatpush1.msra.mxu0 0.0
  %1827 = vmatprep.subr.mxu0 0.0
  %1828 = vmatpush1.msra.mxu0 0.0
  %1829 = vmatprep.subr.mxu0 0.0
  %1830 = vmatpush1.msra.mxu0 0.0
  %1831 = vmatprep.subr.mxu0 0.0
  %1832 = vmatpush1.msra.mxu0 0.0
  %1833 = vmatprep.subr.mxu0 0.0
  %1834 = vmatpush1.msra.mxu0 0.0
  %1835 = vmatprep.subr.mxu0 0.0
  %1836 = vmatpush1.msra.mxu0 0.0
  %1837 = vmatprep.mubr.f32.mxu0 0.0
  %1838 = vmatmul.mubr.f32.gmra.mrb[0].mxu0 %v1771
  %v1839 = vpop.f32.mrb[0].mxu0
  %v1840 = vadd.f32 0.0, %v1839
  %v1841 = vpop.f32.mrb[0].mxu0
  %1842 = vdwg.mxu0
  %1843 = vmatprep.subr.mxu0 0.0
  %1844 = vmatpush1.msra.mxu0 %v39
  %1845 = vmatprep.subr.mxu0 0.0
  %1846 = vmatpush1.msra.mxu0 %v40
  %1847 = vmatprep.subr.mxu0 0.0
  %1848 = vmatpush1.msra.mxu0 %v41
  %1849 = vmatprep.subr.mxu0 0.0
  %1850 = vmatpush1.msra.mxu0 %v42
  %1851 = vmatprep.subr.mxu0 0.0
  %1852 = vmatpush1.msra.mxu0 0.0
  %1853 = vmatprep.subr.mxu0 0.0
  %1854 = vmatpush1.msra.mxu0 0.0
  %1855 = vmatprep.subr.mxu0 0.0
  %1856 = vmatpush1.msra.mxu0 0.0
  %1857 = vmatprep.subr.mxu0 0.0
  %1858 = vmatpush1.msra.mxu0 0.0
  %1859 = vmatprep.subr.mxu0 0.0
  %1860 = vmatpush1.msra.mxu0 0.0
  %1861 = vmatprep.subr.mxu0 0.0
  %1862 = vmatpush1.msra.mxu0 0.0
  %1863 = vmatprep.subr.mxu0 0.0
  %1864 = vmatpush1.msra.mxu0 0.0
  %1865 = vmatprep.subr.mxu0 0.0
  %1866 = vmatpush1.msra.mxu0 0.0
  %1867 = vmatprep.subr.mxu0 0.0
  %1868 = vmatpush1.msra.mxu0 0.0
  %1869 = vmatprep.subr.mxu0 0.0
  %1870 = vmatpush1.msra.mxu0 0.0
  %1871 = vmatprep.subr.mxu0 0.0
  %1872 = vmatpush1.msra.mxu0 0.0
  %1873 = vmatprep.subr.mxu0 0.0
  %1874 = vmatpush1.msra.mxu0 0.0
  %1875 = vmatprep.subr.mxu0 0.0
  %1876 = vmatpush1.msra.mxu0 0.0
  %1877 = vmatprep.subr.mxu0 0.0
  %1878 = vmatpush1.msra.mxu0 0.0
  %1879 = vmatprep.subr.mxu0 0.0
  %1880 = vmatpush1.msra.mxu0 0.0
  %1881 = vmatprep.subr.mxu0 0.0
  %1882 = vmatpush1.msra.mxu0 0.0
  %1883 = vmatprep.subr.mxu0 0.0
  %1884 = vmatpush1.msra.mxu0 0.0
  %1885 = vmatprep.subr.mxu0 0.0
  %1886 = vmatpush1.msra.mxu0 0.0
  %1887 = vmatprep.subr.mxu0 0.0
  %1888 = vmatpush1.msra.mxu0 0.0
  %1889 = vmatprep.subr.mxu0 0.0
  %1890 = vmatpush1.msra.mxu0 0.0
  %1891 = vmatprep.subr.mxu0 0.0
  %1892 = vmatpush1.msra.mxu0 0.0
  %1893 = vmatprep.subr.mxu0 0.0
  %1894 = vmatpush1.msra.mxu0 0.0
  %1895 = vmatprep.subr.mxu0 0.0
  %1896 = vmatpush1.msra.mxu0 0.0
  %1897 = vmatprep.subr.mxu0 0.0
  %1898 = vmatpush1.msra.mxu0 0.0
  %1899 = vmatprep.subr.mxu0 0.0
  %1900 = vmatpush1.msra.mxu0 0.0
  %1901 = vmatprep.subr.mxu0 0.0
  %1902 = vmatpush1.msra.mxu0 0.0
  %1903 = vmatprep.subr.mxu0 0.0
  %1904 = vmatpush1.msra.mxu0 0.0
  %1905 = vmatprep.subr.mxu0 0.0
  %1906 = vmatpush1.msra.mxu0 0.0
  %1907 = vmatprep.mubr.f32.mxu0 0.0
  %1908 = vmatmul.mubr.f32.gmra.mrb[0].mxu0 %v1670
  %v1909 = vpop.f32.mrb[0].mxu0
  %v1910 = vadd.f32 %v1840, %v1909
  %v1911 = vpop.f32.mrb[0].mxu0
  %1912 = vdwg.mxu0
  %v1913 = vadd.f32 %v1910, %v551
  %v1914 = vtanh.pop %v1913
  %v1915 = vxor.u32 %v1913, 2147483648
  %v1916 = vmul.f32 %v1915, 1.442695
  %v1917 = vpow.pop %v1916
  %v1918 = vadd.f32 %v1917, 1.0
  %v1919 = vrcp.pop %v1918
  %v1920 = vmul.f32 1.0, %v1919
  %v1921 = vsel %vm205, %v1914, %v1920
  %v1922 = vmul.f32 %v1921, %v1660
  %1924 = vrot.lane.b32.xlu0 %v1921, 64
  %v1925 = vpop.permute.xlu0 %1924
  %v1927 = vmul.f32 %v1921, %v1925
  %1929 = vrot.lane.b32.xlu0 %v1927, 32
  %v1930 = vpop.permute.xlu0 %1929
  %v1932 = vadd.f32 %v1922, %v1930
  %v1933 = vtanh.pop %v1932
  %1935 = vrot.lane.b32.xlu0 %v1933, 64
  %v1936 = vpop.permute.xlu0 %1935
  %v1938 = vmul.f32 %v1921, %v1936
  %1940 = vrot.lane.b32.xlu0 %v1767, 32
  %v1941 = vpop.permute.xlu0 %1940
  %v1942 = vsel %vm206, %v1941, 0
  %1944 = vmatprep.subr.mxu0 0.0
  %1945 = vmatpush1.msra.mxu0 %v43
  %1946 = vmatprep.subr.mxu0 0.0
  %1947 = vmatpush1.msra.mxu0 %v44
  %1948 = vmatprep.subr.mxu0 0.0
  %1949 = vmatpush1.msra.mxu0 %v45
  %1950 = vmatprep.subr.mxu0 0.0
  %1951 = vmatpush1.msra.mxu0 %v46
  %1952 = vmatprep.subr.mxu0 0.0
  %1953 = vmatpush1.msra.mxu0 0.0
  %1954 = vmatprep.subr.mxu0 0.0
  %1955 = vmatpush1.msra.mxu0 0.0
  %1956 = vmatprep.subr.mxu0 0.0
  %1957 = vmatpush1.msra.mxu0 0.0
  %1958 = vmatprep.subr.mxu0 0.0
  %1959 = vmatpush1.msra.mxu0 0.0
  %1960 = vmatprep.subr.mxu0 0.0
  %1961 = vmatpush1.msra.mxu0 0.0
  %1962 = vmatprep.subr.mxu0 0.0
  %1963 = vmatpush1.msra.mxu0 0.0
  %1964 = vmatprep.subr.mxu0 0.0
  %1965 = vmatpush1.msra.mxu0 0.0
  %1966 = vmatprep.subr.mxu0 0.0
  %1967 = vmatpush1.msra.mxu0 0.0
  %1968 = vmatprep.subr.mxu0 0.0
  %1969 = vmatpush1.msra.mxu0 0.0
  %1970 = vmatprep.subr.mxu0 0.0
  %1971 = vmatpush1.msra.mxu0 0.0
  %1972 = vmatprep.subr.mxu0 0.0
  %1973 = vmatpush1.msra.mxu0 0.0
  %1974 = vmatprep.subr.mxu0 0.0
  %1975 = vmatpush1.msra.mxu0 0.0
  %1976 = vmatprep.subr.mxu0 0.0
  %1977 = vmatpush1.msra.mxu0 0.0
  %1978 = vmatprep.subr.mxu0 0.0
  %1979 = vmatpush1.msra.mxu0 0.0
  %1980 = vmatprep.subr.mxu0 0.0
  %1981 = vmatpush1.msra.mxu0 0.0
  %1982 = vmatprep.subr.mxu0 0.0
  %1983 = vmatpush1.msra.mxu0 0.0
  %1984 = vmatprep.subr.mxu0 0.0
  %1985 = vmatpush1.msra.mxu0 0.0
  %1986 = vmatprep.subr.mxu0 0.0
  %1987 = vmatpush1.msra.mxu0 0.0
  %1988 = vmatprep.subr.mxu0 0.0
  %1989 = vmatpush1.msra.mxu0 0.0
  %1990 = vmatprep.subr.mxu0 0.0
  %1991 = vmatpush1.msra.mxu0 0.0
  %1992 = vmatprep.subr.mxu0 0.0
  %1993 = vmatpush1.msra.mxu0 0.0
  %1994 = vmatprep.subr.mxu0 0.0
  %1995 = vmatpush1.msra.mxu0 0.0
  %1996 = vmatprep.subr.mxu0 0.0
  %1997 = vmatpush1.msra.mxu0 0.0
  %1998 = vmatprep.subr.mxu0 0.0
  %1999 = vmatpush1.msra.mxu0 0.0
  %2000 = vmatprep.subr.mxu0 0.0
  %2001 = vmatpush1.msra.mxu0 0.0
  %2002 = vmatprep.subr.mxu0 0.0
  %2003 = vmatpush1.msra.mxu0 0.0
  %2004 = vmatprep.subr.mxu0 0.0
  %2005 = vmatpush1.msra.mxu0 0.0
  %2006 = vmatprep.subr.mxu0 0.0
  %2007 = vmatpush1.msra.mxu0 0.0
  %2008 = vmatprep.mubr.f32.mxu0 0.0
  %2009 = vmatmul.mubr.f32.gmra.mrb[0].mxu0 %v1942
  %v2010 = vpop.f32.mrb[0].mxu0
  %v2011 = vadd.f32 0.0, %v2010
  %v2012 = vpop.f32.mrb[0].mxu0
  %2013 = vdwg.mxu0
  %v2014 = vadd.f32 %v198, %v2011
  %v2015 = vtanh.pop %v2014
  %v2016 = vxor.u32 %v2014, 2147483648
  %v2017 = vmul.f32 %v2016, 1.442695
  %v2018 = vpow.pop %v2017
  %v2019 = vadd.f32 %v2018, 1.0
  %v2020 = vrcp.pop %v2019
  %v2021 = vmul.f32 1.0, %v2020
  %v2022 = vsel %vm205, %v2015, %v2021
  %v2023 = vmul.f32 %v2022, %v1761
  %2025 = vrot.lane.b32.xlu0 %v2022, 64
  %v2026 = vpop.permute.xlu0 %2025
  %v2028 = vmul.f32 %v2022, %v2026
  %2030 = vrot.lane.b32.xlu0 %v2028, 32
  %v2031 = vpop.permute.xlu0 %2030
  %v2033 = vadd.f32 %v2023, %v2031
  %v2034 = vtanh.pop %v2033
  %2036 = vrot.lane.b32.xlu0 %v2034, 64
  %v2037 = vpop.permute.xlu0 %2036
  %v2039 = vmul.f32 %v2022, %v2037
  %2041 = vrot.lane.b32.xlu0 %v1938, 32
  %v2042 = vpop.permute.xlu0 %2041
  %v2043 = vsel %vm206, %v2042, 0
  %2045 = vmatprep.subr.mxu0 0.0
  %2046 = vmatpush1.msra.mxu0 %v47
  %2047 = vmatprep.subr.mxu0 0.0
  %2048 = vmatpush1.msra.mxu0 %v48
  %2049 = vmatprep.subr.mxu0 0.0
  %2050 = vmatpush1.msra.mxu0 %v49
  %2051 = vmatprep.subr.mxu0 0.0
  %2052 = vmatpush1.msra.mxu0 %v50
  %2053 = vmatprep.subr.mxu0 0.0
  %2054 = vmatpush1.msra.mxu0 0.0
  %2055 = vmatprep.subr.mxu0 0.0
  %2056 = vmatpush1.msra.mxu0 0.0
  %2057 = vmatprep.subr.mxu0 0.0
  %2058 = vmatpush1.msra.mxu0 0.0
  %2059 = vmatprep.subr.mxu0 0.0
  %2060 = vmatpush1.msra.mxu0 0.0
  %2061 = vmatprep.subr.mxu0 0.0
  %2062 = vmatpush1.msra.mxu0 0.0
  %2063 = vmatprep.subr.mxu0 0.0
  %2064 = vmatpush1.msra.mxu0 0.0
  %2065 = vmatprep.subr.mxu0 0.0
  %2066 = vmatpush1.msra.mxu0 0.0
  %2067 = vmatprep.subr.mxu0 0.0
  %2068 = vmatpush1.msra.mxu0 0.0
  %2069 = vmatprep.subr.mxu0 0.0
  %2070 = vmatpush1.msra.mxu0 0.0
  %2071 = vmatprep.subr.mxu0 0.0
  %2072 = vmatpush1.msra.mxu0 0.0
  %2073 = vmatprep.subr.mxu0 0.0
  %2074 = vmatpush1.msra.mxu0 0.0
  %2075 = vmatprep.subr.mxu0 0.0
  %2076 = vmatpush1.msra.mxu0 0.0
  %2077 = vmatprep.subr.mxu0 0.0
  %2078 = vmatpush1.msra.mxu0 0.0
  %2079 = vmatprep.subr.mxu0 0.0
  %2080 = vmatpush1.msra.mxu0 0.0
  %2081 = vmatprep.subr.mxu0 0.0
  %2082 = vmatpush1.msra.mxu0 0.0
  %2083 = vmatprep.subr.mxu0 0.0
  %2084 = vmatpush1.msra.mxu0 0.0
  %2085 = vmatprep.subr.mxu0 0.0
  %2086 = vmatpush1.msra.mxu0 0.0
  %2087 = vmatprep.subr.mxu0 0.0
  %2088 = vmatpush1.msra.mxu0 0.0
  %2089 = vmatprep.subr.mxu0 0.0
  %2090 = vmatpush1.msra.mxu0 0.0
  %2091 = vmatprep.subr.mxu0 0.0
  %2092 = vmatpush1.msra.mxu0 0.0
  %2093 = vmatprep.subr.mxu0 0.0
  %2094 = vmatpush1.msra.mxu0 0.0
  %2095 = vmatprep.subr.mxu0 0.0
  %2096 = vmatpush1.msra.mxu0 0.0
  %2097 = vmatprep.subr.mxu0 0.0
  %2098 = vmatpush1.msra.mxu0 0.0
  %2099 = vmatprep.subr.mxu0 0.0
  %2100 = vmatpush1.msra.mxu0 0.0
  %2101 = vmatprep.subr.mxu0 0.0
  %2102 = vmatpush1.msra.mxu0 0.0
  %2103 = vmatprep.subr.mxu0 0.0
  %2104 = vmatpush1.msra.mxu0 0.0
  %2105 = vmatprep.subr.mxu0 0.0
  %2106 = vmatpush1.msra.mxu0 0.0
  %2107 = vmatprep.subr.mxu0 0.0
  %2108 = vmatpush1.msra.mxu0 0.0
  %2109 = vmatprep.mubr.f32.mxu0 0.0
  %2110 = vmatmul.mubr.f32.gmra.mrb[0].mxu0 %v2043
  %v2111 = vpop.f32.mrb[0].mxu0
  %v2112 = vadd.f32 0.0, %v2111
  %v2113 = vpop.f32.mrb[0].mxu0
  %2114 = vdwg.mxu0
  %2115 = vmatprep.subr.mxu0 0.0
  %2116 = vmatpush1.msra.mxu0 %v39
  %2117 = vmatprep.subr.mxu0 0.0
  %2118 = vmatpush1.msra.mxu0 %v40
  %2119 = vmatprep.subr.mxu0 0.0
  %2120 = vmatpush1.msra.mxu0 %v41
  %2121 = vmatprep.subr.mxu0 0.0
  %2122 = vmatpush1.msra.mxu0 %v42
  %2123 = vmatprep.subr.mxu0 0.0
  %2124 = vmatpush1.msra.mxu0 0.0
  %2125 = vmatprep.subr.mxu0 0.0
  %2126 = vmatpush1.msra.mxu0 0.0
  %2127 = vmatprep.subr.mxu0 0.0
  %2128 = vmatpush1.msra.mxu0 0.0
  %2129 = vmatprep.subr.mxu0 0.0
  %2130 = vmatpush1.msra.mxu0 0.0
  %2131 = vmatprep.subr.mxu0 0.0
  %2132 = vmatpush1.msra.mxu0 0.0
  %2133 = vmatprep.subr.mxu0 0.0
  %2134 = vmatpush1.msra.mxu0 0.0
  %2135 = vmatprep.subr.mxu0 0.0
  %2136 = vmatpush1.msra.mxu0 0.0
  %2137 = vmatprep.subr.mxu0 0.0
  %2138 = vmatpush1.msra.mxu0 0.0
  %2139 = vmatprep.subr.mxu0 0.0
  %2140 = vmatpush1.msra.mxu0 0.0
  %2141 = vmatprep.subr.mxu0 0.0
  %2142 = vmatpush1.msra.mxu0 0.0
  %2143 = vmatprep.subr.mxu0 0.0
  %2144 = vmatpush1.msra.mxu0 0.0
  %2145 = vmatprep.subr.mxu0 0.0
  %2146 = vmatpush1.msra.mxu0 0.0
  %2147 = vmatprep.subr.mxu0 0.0
  %2148 = vmatpush1.msra.mxu0 0.0
  %2149 = vmatprep.subr.mxu0 0.0
  %2150 = vmatpush1.msra.mxu0 0.0
  %2151 = vmatprep.subr.mxu0 0.0
  %2152 = vmatpush1.msra.mxu0 0.0
  %2153 = vmatprep.subr.mxu0 0.0
  %2154 = vmatpush1.msra.mxu0 0.0
  %2155 = vmatprep.subr.mxu0 0.0
  %2156 = vmatpush1.msra.mxu0 0.0
  %2157 = vmatprep.subr.mxu0 0.0
  %2158 = vmatpush1.msra.mxu0 0.0
  %2159 = vmatprep.subr.mxu0 0.0
  %2160 = vmatpush1.msra.mxu0 0.0
  %2161 = vmatprep.subr.mxu0 0.0
  %2162 = vmatpush1.msra.mxu0 0.0
  %2163 = vmatprep.subr.mxu0 0.0
  %2164 = vmatpush1.msra.mxu0 0.0
  %2165 = vmatprep.subr.mxu0 0.0
  %2166 = vmatpush1.msra.mxu0 0.0
  %2167 = vmatprep.subr.mxu0 0.0
  %2168 = vmatpush1.msra.mxu0 0.0
  %2169 = vmatprep.subr.mxu0 0.0
  %2170 = vmatpush1.msra.mxu0 0.0
  %2171 = vmatprep.subr.mxu0 0.0
  %2172 = vmatpush1.msra.mxu0 0.0
  %2173 = vmatprep.subr.mxu0 0.0
  %2174 = vmatpush1.msra.mxu0 0.0
  %2175 = vmatprep.subr.mxu0 0.0
  %2176 = vmatpush1.msra.mxu0 0.0
  %2177 = vmatprep.subr.mxu0 0.0
  %2178 = vmatpush1.msra.mxu0 0.0
  %2179 = vmatprep.mubr.f32.mxu0 0.0
  %2180 = vmatmul.mubr.f32.gmra.mrb[0].mxu0 %v1942
  %v2181 = vpop.f32.mrb[0].mxu0
  %v2182 = vadd.f32 %v2112, %v2181
  %v2183 = vpop.f32.mrb[0].mxu0
  %2184 = vdwg.mxu0
  %v2185 = vadd.f32 %v2182, %v551
  %v2186 = vtanh.pop %v2185
  %v2187 = vxor.u32 %v2185, 2147483648
  %v2188 = vmul.f32 %v2187, 1.442695
  %v2189 = vpow.pop %v2188
  %v2190 = vadd.f32 %v2189, 1.0
  %v2191 = vrcp.pop %v2190
  %v2192 = vmul.f32 1.0, %v2191
  %v2193 = vsel %vm205, %v2186, %v2192
  %v2194 = vmul.f32 %v2193, %v1932
  %2196 = vrot.lane.b32.xlu0 %v2193, 64
  %v2197 = vpop.permute.xlu0 %2196
  %v2199 = vmul.f32 %v2193, %v2197
  %2201 = vrot.lane.b32.xlu0 %v2199, 32
  %v2202 = vpop.permute.xlu0 %2201
  %v2204 = vadd.f32 %v2194, %v2202
  %v2205 = vtanh.pop %v2204
  %2207 = vrot.lane.b32.xlu0 %v2205, 64
  %v2208 = vpop.permute.xlu0 %2207
  %v2210 = vmul.f32 %v2193, %v2208
  %2212 = vrot.lane.b32.xlu0 %v2210, 32
  %v2213 = vpop.permute.xlu0 %2212
  %v2214 = vsel %vm206, %v2213, 0
  %2216 = vmatprep.subr.mxu0 0.0
  %2217 = vmatpush1.msra.mxu0 %v47
  %2218 = vmatprep.subr.mxu0 0.0
  %2219 = vmatpush1.msra.mxu0 %v48
  %2220 = vmatprep.subr.mxu0 0.0
  %2221 = vmatpush1.msra.mxu0 %v49
  %2222 = vmatprep.subr.mxu0 0.0
  %2223 = vmatpush1.msra.mxu0 %v50
  %2224 = vmatprep.subr.mxu0 0.0
  %2225 = vmatpush1.msra.mxu0 0.0
  %2226 = vmatprep.subr.mxu0 0.0
  %2227 = vmatpush1.msra.mxu0 0.0
  %2228 = vmatprep.subr.mxu0 0.0
  %2229 = vmatpush1.msra.mxu0 0.0
  %2230 = vmatprep.subr.mxu0 0.0
  %2231 = vmatpush1.msra.mxu0 0.0
  %2232 = vmatprep.subr.mxu0 0.0
  %2233 = vmatpush1.msra.mxu0 0.0
  %2234 = vmatprep.subr.mxu0 0.0
  %2235 = vmatpush1.msra.mxu0 0.0
  %2236 = vmatprep.subr.mxu0 0.0
  %2237 = vmatpush1.msra.mxu0 0.0
  %2238 = vmatprep.subr.mxu0 0.0
  %2239 = vmatpush1.msra.mxu0 0.0
  %2240 = vmatprep.subr.mxu0 0.0
  %2241 = vmatpush1.msra.mxu0 0.0
  %2242 = vmatprep.subr.mxu0 0.0
  %2243 = vmatpush1.msra.mxu0 0.0
  %2244 = vmatprep.subr.mxu0 0.0
  %2245 = vmatpush1.msra.mxu0 0.0
  %2246 = vmatprep.subr.mxu0 0.0
  %2247 = vmatpush1.msra.mxu0 0.0
  %2248 = vmatprep.subr.mxu0 0.0
  %2249 = vmatpush1.msra.mxu0 0.0
  %2250 = vmatprep.subr.mxu0 0.0
  %2251 = vmatpush1.msra.mxu0 0.0
  %2252 = vmatprep.subr.mxu0 0.0
  %2253 = vmatpush1.msra.mxu0 0.0
  %2254 = vmatprep.subr.mxu0 0.0
  %2255 = vmatpush1.msra.mxu0 0.0
  %2256 = vmatprep.subr.mxu0 0.0
  %2257 = vmatpush1.msra.mxu0 0.0
  %2258 = vmatprep.subr.mxu0 0.0
  %2259 = vmatpush1.msra.mxu0 0.0
  %2260 = vmatprep.subr.mxu0 0.0
  %2261 = vmatpush1.msra.mxu0 0.0
  %2262 = vmatprep.subr.mxu0 0.0
  %2263 = vmatpush1.msra.mxu0 0.0
  %2264 = vmatprep.subr.mxu0 0.0
  %2265 = vmatpush1.msra.mxu0 0.0
  %2266 = vmatprep.subr.mxu0 0.0
  %2267 = vmatpush1.msra.mxu0 0.0
  %2268 = vmatprep.subr.mxu0 0.0
  %2269 = vmatpush1.msra.mxu0 0.0
  %2270 = vmatprep.subr.mxu0 0.0
  %2271 = vmatpush1.msra.mxu0 0.0
  %2272 = vmatprep.subr.mxu0 0.0
  %2273 = vmatpush1.msra.mxu0 0.0
  %2274 = vmatprep.subr.mxu0 0.0
  %2275 = vmatpush1.msra.mxu0 0.0
  %2276 = vmatprep.subr.mxu0 0.0
  %2277 = vmatpush1.msra.mxu0 0.0
  %2278 = vmatprep.subr.mxu0 0.0
  %2279 = vmatpush1.msra.mxu0 0.0
  %2280 = vmatprep.mubr.f32.mxu0 0.0
  %2281 = vmatmul.mubr.f32.gmra.mrb[0].mxu0 %v2214
  %v2282 = vpop.f32.mrb[0].mxu0
  %v2283 = vadd.f32 0.0, %v2282
  %v2284 = vpop.f32.mrb[0].mxu0
  %2285 = vdwg.mxu0
  %2287 = vrot.lane.b32.xlu0 %v2039, 32
  %v2288 = vpop.permute.xlu0 %2287
  %v2289 = vsel %vm206, %v2288, 0
  %2291 = vmatprep.subr.mxu0 0.0
  %2292 = vmatpush1.msra.mxu0 %v39
  %2293 = vmatprep.subr.mxu0 0.0
  %2294 = vmatpush1.msra.mxu0 %v40
  %2295 = vmatprep.subr.mxu0 0.0
  %2296 = vmatpush1.msra.mxu0 %v41
  %2297 = vmatprep.subr.mxu0 0.0
  %2298 = vmatpush1.msra.mxu0 %v42
  %2299 = vmatprep.subr.mxu0 0.0
  %2300 = vmatpush1.msra.mxu0 0.0
  %2301 = vmatprep.subr.mxu0 0.0
  %2302 = vmatpush1.msra.mxu0 0.0
  %2303 = vmatprep.subr.mxu0 0.0
  %2304 = vmatpush1.msra.mxu0 0.0
  %2305 = vmatprep.subr.mxu0 0.0
  %2306 = vmatpush1.msra.mxu0 0.0
  %2307 = vmatprep.subr.mxu0 0.0
  %2308 = vmatpush1.msra.mxu0 0.0
  %2309 = vmatprep.subr.mxu0 0.0
  %2310 = vmatpush1.msra.mxu0 0.0
  %2311 = vmatprep.subr.mxu0 0.0
  %2312 = vmatpush1.msra.mxu0 0.0
  %2313 = vmatprep.subr.mxu0 0.0
  %2314 = vmatpush1.msra.mxu0 0.0
  %2315 = vmatprep.subr.mxu0 0.0
  %2316 = vmatpush1.msra.mxu0 0.0
  %2317 = vmatprep.subr.mxu0 0.0
  %2318 = vmatpush1.msra.mxu0 0.0
  %2319 = vmatprep.subr.mxu0 0.0
  %2320 = vmatpush1.msra.mxu0 0.0
  %2321 = vmatprep.subr.mxu0 0.0
  %2322 = vmatpush1.msra.mxu0 0.0
  %2323 = vmatprep.subr.mxu0 0.0
  %2324 = vmatpush1.msra.mxu0 0.0
  %2325 = vmatprep.subr.mxu0 0.0
  %2326 = vmatpush1.msra.mxu0 0.0
  %2327 = vmatprep.subr.mxu0 0.0
  %2328 = vmatpush1.msra.mxu0 0.0
  %2329 = vmatprep.subr.mxu0 0.0
  %2330 = vmatpush1.msra.mxu0 0.0
  %2331 = vmatprep.subr.mxu0 0.0
  %2332 = vmatpush1.msra.mxu0 0.0
  %2333 = vmatprep.subr.mxu0 0.0
  %2334 = vmatpush1.msra.mxu0 0.0
  %2335 = vmatprep.subr.mxu0 0.0
  %2336 = vmatpush1.msra.mxu0 0.0
  %2337 = vmatprep.subr.mxu0 0.0
  %2338 = vmatpush1.msra.mxu0 0.0
  %2339 = vmatprep.subr.mxu0 0.0
  %2340 = vmatpush1.msra.mxu0 0.0
  %2341 = vmatprep.subr.mxu0 0.0
  %2342 = vmatpush1.msra.mxu0 0.0
  %2343 = vmatprep.subr.mxu0 0.0
  %2344 = vmatpush1.msra.mxu0 0.0
  %2345 = vmatprep.subr.mxu0 0.0
  %2346 = vmatpush1.msra.mxu0 0.0
  %2347 = vmatprep.subr.mxu0 0.0
  %2348 = vmatpush1.msra.mxu0 0.0
  %2349 = vmatprep.subr.mxu0 0.0
  %2350 = vmatpush1.msra.mxu0 0.0
  %2351 = vmatprep.subr.mxu0 0.0
  %2352 = vmatpush1.msra.mxu0 0.0
  %2353 = vmatprep.subr.mxu0 0.0
  %2354 = vmatpush1.msra.mxu0 0.0
  %2355 = vmatprep.mubr.f32.mxu0 0.0
  %2356 = vmatmul.mubr.f32.gmra.mrb[0].mxu0 %v2289
  %v2357 = vpop.f32.mrb[0].mxu0
  %v2358 = vadd.f32 %v2283, %v2357
  %v2359 = vpop.f32.mrb[0].mxu0
  %2360 = vdwg.mxu0
  %v2361 = vadd.f32 %v2358, %v551
  %v2362 = vtanh.pop %v2361
  %v2363 = vxor.u32 %v2361, 2147483648
  %v2364 = vmul.f32 %v2363, 1.442695
  %v2365 = vpow.pop %v2364
  %v2366 = vadd.f32 %v2365, 1.0
  %v2367 = vrcp.pop %v2366
  %v2368 = vmul.f32 1.0, %v2367
  %v2369 = vsel %vm205, %v2362, %v2368
  %v2370 = vmul.f32 %v2369, %v2204
  %2372 = vrot.lane.b32.xlu0 %v2369, 64
  %v2373 = vpop.permute.xlu0 %2372
  %v2375 = vmul.f32 %v2369, %v2373
  %2377 = vrot.lane.b32.xlu0 %v2375, 32
  %v2378 = vpop.permute.xlu0 %2377
  %v2380 = vadd.f32 %v2370, %v2378
  %v2381 = vtanh.pop %v2380
  %2383 = vrot.lane.b32.xlu0 %v2381, 64
  %v2384 = vpop.permute.xlu0 %2383
  %v2386 = vmul.f32 %v2369, %v2384
  %v2387 = vld [vmem:[%s7] sm:$0xff]
  %v2388 = vld [vmem:[%s7 + $0x8] sm:$0xff]
  %v2389 = vld [vmem:[%s7 + $0x10] sm:$0xff]
  %v2390 = vld [vmem:[%s7 + $0x18] sm:$0xff]
  %v2391 = vld [vmem:[%s8] sm:$0x1]
  %v2393 = vlaneseq
  %v2394 = vshrl.u32 %v2393, 7
  %v2395 = vsub.s32 0, %v2394
  %v2396 = vrot.slane %v2391, %v2395
  %2399 = vrot.lane.b32.xlu0 %v2386, 32
  %v2400 = vpop.permute.xlu0 %2399
  %v2401 = vsel %vm206, %v2400, 0
  %2403 = vmatprep.subr.mxu0 0.0
  %2404 = vmatpush1.msra.mxu0 %v2387
  %2405 = vmatprep.subr.mxu0 0.0
  %2406 = vmatpush1.msra.mxu0 %v2388
  %2407 = vmatprep.subr.mxu0 0.0
  %2408 = vmatpush1.msra.mxu0 %v2389
  %2409 = vmatprep.subr.mxu0 0.0
  %2410 = vmatpush1.msra.mxu0 %v2390
  %2411 = vmatprep.subr.mxu0 0.0
  %2412 = vmatpush1.msra.mxu0 0.0
  %2413 = vmatprep.subr.mxu0 0.0
  %2414 = vmatpush1.msra.mxu0 0.0
  %2415 = vmatprep.subr.mxu0 0.0
  %2416 = vmatpush1.msra.mxu0 0.0
  %2417 = vmatprep.subr.mxu0 0.0
  %2418 = vmatpush1.msra.mxu0 0.0
  %2419 = vmatprep.subr.mxu0 0.0
  %2420 = vmatpush1.msra.mxu0 0.0
  %2421 = vmatprep.subr.mxu0 0.0
  %2422 = vmatpush1.msra.mxu0 0.0
  %2423 = vmatprep.subr.mxu0 0.0
  %2424 = vmatpush1.msra.mxu0 0.0
  %2425 = vmatprep.subr.mxu0 0.0
  %2426 = vmatpush1.msra.mxu0 0.0
  %2427 = vmatprep.subr.mxu0 0.0
  %2428 = vmatpush1.msra.mxu0 0.0
  %2429 = vmatprep.subr.mxu0 0.0
  %2430 = vmatpush1.msra.mxu0 0.0
  %2431 = vmatprep.subr.mxu0 0.0
  %2432 = vmatpush1.msra.mxu0 0.0
  %2433 = vmatprep.subr.mxu0 0.0
  %2434 = vmatpush1.msra.mxu0 0.0
  %2435 = vmatprep.subr.mxu0 0.0
  %2436 = vmatpush1.msra.mxu0 0.0
  %2437 = vmatprep.subr.mxu0 0.0
  %2438 = vmatpush1.msra.mxu0 0.0
  %2439 = vmatprep.subr.mxu0 0.0
  %2440 = vmatpush1.msra.mxu0 0.0
  %2441 = vmatprep.subr.mxu0 0.0
  %2442 = vmatpush1.msra.mxu0 0.0
  %2443 = vmatprep.subr.mxu0 0.0
  %2444 = vmatpush1.msra.mxu0 0.0
  %2445 = vmatprep.subr.mxu0 0.0
  %2446 = vmatpush1.msra.mxu0 0.0
  %2447 = vmatprep.subr.mxu0 0.0
  %2448 = vmatpush1.msra.mxu0 0.0
  %2449 = vmatprep.subr.mxu0 0.0
  %2450 = vmatpush1.msra.mxu0 0.0
  %2451 = vmatprep.subr.mxu0 0.0
  %2452 = vmatpush1.msra.mxu0 0.0
  %2453 = vmatprep.subr.mxu0 0.0
  %2454 = vmatpush1.msra.mxu0 0.0
  %2455 = vmatprep.subr.mxu0 0.0
  %2456 = vmatpush1.msra.mxu0 0.0
  %2457 = vmatprep.subr.mxu0 0.0
  %2458 = vmatpush1.msra.mxu0 0.0
  %2459 = vmatprep.subr.mxu0 0.0
  %2460 = vmatpush1.msra.mxu0 0.0
  %2461 = vmatprep.subr.mxu0 0.0
  %2462 = vmatpush1.msra.mxu0 0.0
  %2463 = vmatprep.subr.mxu0 0.0
  %2464 = vmatpush1.msra.mxu0 0.0
  %2465 = vmatprep.subr.mxu0 0.0
  %2466 = vmatpush1.msra.mxu0 0.0
  %2467 = vmatprep.mubr.f32.mxu0 0.0
  %2468 = vmatmul.mubr.f32.gmra.mrb[0].mxu0 %v2401
  %v2469 = vpop.f32.mrb[0].mxu0
  %v2470 = vadd.f32 %v2396, %v2469
  %v2471 = vpop.f32.mrb[0].mxu0
  %2472 = vdwg.mxu0
  %v2473 = vmax.f32 %v2470, 0.0
  %v2474 = vld [vmem:[%s9] sm:$0xff]
  %v2475 = vld [vmem:[%s9 + $0x8] sm:$0xff]
  %v2476 = vld [vmem:[%s9 + $0x10] sm:$0xff]
  %v2477 = vld [vmem:[%s9 + $0x18] sm:$0xff]
  %v2478 = vld [vmem:[%s10] sm:$0x1]
  %v2480 = vlaneseq
  %v2481 = vshrl.u32 %v2480, 7
  %v2482 = vsub.s32 0, %v2481
  %v2483 = vrot.slane %v2478, %v2482
  %v2486 = vsel %vm206, %v2473, 0
  %2488 = vmatprep.subr.mxu0 0.0
  %2489 = vmatpush1.msra.mxu0 %v2474
  %2490 = vmatprep.subr.mxu0 0.0
  %2491 = vmatpush1.msra.mxu0 %v2475
  %2492 = vmatprep.subr.mxu0 0.0
  %2493 = vmatpush1.msra.mxu0 %v2476
  %2494 = vmatprep.subr.mxu0 0.0
  %2495 = vmatpush1.msra.mxu0 %v2477
  %2496 = vmatprep.subr.mxu0 0.0
  %2497 = vmatpush1.msra.mxu0 0.0
  %2498 = vmatprep.subr.mxu0 0.0
  %2499 = vmatpush1.msra.mxu0 0.0
  %2500 = vmatprep.subr.mxu0 0.0
  %2501 = vmatpush1.msra.mxu0 0.0
  %2502 = vmatprep.subr.mxu0 0.0
  %2503 = vmatpush1.msra.mxu0 0.0
  %2504 = vmatprep.subr.mxu0 0.0
  %2505 = vmatpush1.msra.mxu0 0.0
  %2506 = vmatprep.subr.mxu0 0.0
  %2507 = vmatpush1.msra.mxu0 0.0
  %2508 = vmatprep.subr.mxu0 0.0
  %2509 = vmatpush1.msra.mxu0 0.0
  %2510 = vmatprep.subr.mxu0 0.0
  %2511 = vmatpush1.msra.mxu0 0.0
  %2512 = vmatprep.subr.mxu0 0.0
  %2513 = vmatpush1.msra.mxu0 0.0
  %2514 = vmatprep.subr.mxu0 0.0
  %2515 = vmatpush1.msra.mxu0 0.0
  %2516 = vmatprep.subr.mxu0 0.0
  %2517 = vmatpush1.msra.mxu0 0.0
  %2518 = vmatprep.subr.mxu0 0.0
  %2519 = vmatpush1.msra.mxu0 0.0
  %2520 = vmatprep.subr.mxu0 0.0
  %2521 = vmatpush1.msra.mxu0 0.0
  %2522 = vmatprep.subr.mxu0 0.0
  %2523 = vmatpush1.msra.mxu0 0.0
  %2524 = vmatprep.subr.mxu0 0.0
  %2525 = vmatpush1.msra.mxu0 0.0
  %2526 = vmatprep.subr.mxu0 0.0
  %2527 = vmatpush1.msra.mxu0 0.0
  %2528 = vmatprep.subr.mxu0 0.0
  %2529 = vmatpush1.msra.mxu0 0.0
  %2530 = vmatprep.subr.mxu0 0.0
  %2531 = vmatpush1.msra.mxu0 0.0
  %2532 = vmatprep.subr.mxu0 0.0
  %2533 = vmatpush1.msra.mxu0 0.0
  %2534 = vmatprep.subr.mxu0 0.0
  %2535 = vmatpush1.msra.mxu0 0.0
  %2536 = vmatprep.subr.mxu0 0.0
  %2537 = vmatpush1.msra.mxu0 0.0
  %2538 = vmatprep.subr.mxu0 0.0
  %2539 = vmatpush1.msra.mxu0 0.0
  %2540 = vmatprep.subr.mxu0 0.0
  %2541 = vmatpush1.msra.mxu0 0.0
  %2542 = vmatprep.subr.mxu0 0.0
  %2543 = vmatpush1.msra.mxu0 0.0
  %2544 = vmatprep.subr.mxu0 0.0
  %2545 = vmatpush1.msra.mxu0 0.0
  %2546 = vmatprep.subr.mxu0 0.0
  %2547 = vmatpush1.msra.mxu0 0.0
  %2548 = vmatprep.subr.mxu0 0.0
  %2549 = vmatpush1.msra.mxu0 0.0
  %2550 = vmatprep.subr.mxu0 0.0
  %2551 = vmatpush1.msra.mxu0 0.0
  %2552 = vmatprep.mubr.f32.mxu0 0.0
  %2553 = vmatmul.mubr.f32.gmra.mrb[0].mxu0 %v2486
  %v2554 = vpop.f32.mrb[0].mxu0
  %v2555 = vadd.f32 %v2483, %v2554
  %v2556 = vpop.f32.mrb[0].mxu0
  %2557 = vdwg.mxu0
  %v2558 = vxor.u32 %v2555, 2147483648
  %v2559 = vmul.f32 %v2558, 1.442695
  %v2560 = vpow.pop %v2559
  %v2561 = vadd.f32 %v2560, 1.0
  %v2562 = vrcp.pop %v2561
  %v2563 = vmul.f32 1.0, %v2562
  %2564 = vst [vmem:[%s11] sm:$0xff] %v2563
  // Predicated region
  $region46: #{lstm_model_forward.1} parent=0 // pred_check
    _
  $region47: #{lstm_model_forward.1} parent=0 // pred_check_branch
    %2566 = sbr.rel (0) target = $region49
  $region48: #{lstm_model_forward.1} parent=0 // pred_region
    _
  $region49: #{lstm_model_forward.1} parent=0 // pred_fallthru
    _
  // Predicated region
  $region50: #{lstm_model_forward.1} parent=0 // pred_check
    _
  $region51: #{lstm_model_forward.1} parent=0 // pred_check_branch
    %2568 = sbr.rel (0) target = $region53
  $region52: #{lstm_model_forward.1} parent=0 // pred_region
    _
  $region53: #{lstm_model_forward.1} parent=0 // pred_fallthru
    _

</llo_original>
